<compile_context>
chip_gen: v7x
topology: tpu7x:2x2x1
jax: 0.10.0
libtpu: 0.0.40
codegen_flags: <defaults>
</compile_context>

<pallas_src>
import jax
import jax.numpy as jnp
from jax.experimental import pallas as pl
from jax.experimental.pallas import tpu as pltpu

LANE = 128  # TPU vreg lane width; all feature blocks are padded to this at pack time.


# ----------------------------------------------------------------------------
# Fused kernel: CharCNN -> gated R-GCN layers (with skips) -> linear readout +
# subgraph mean pooling. Whole-array VMEM blocks, no grid.
# ----------------------------------------------------------------------------
def make_fused_kernel(*, B, N, L, widths, n_edge_types, d_pad, n_layers):
    R = B * N
    net = n_edge_types
    DP = d_pad
    w_min, w_max = min(widths), max(widths)
    assert L >= w_max, "char sequence shorter than largest conv filter"
    T_union = L - w_min + 1          # window starts needed by the narrowest filter
    T_full = L - w_max + 1           # window starts valid for EVERY filter

    def kernel(cols_ref, ntype_ref, adj_ref, memb_ref,
               cw_ref, cb_ref, tmask_ref,
               gw_ref, gb_ref, ow_ref, ob_ref,
               o_ref, stacked_ref):
        # -------- CharCNN: ONE fused im2col matmul for all filter widths --------
        conv = jnp.maximum(
            jnp.dot(cols_ref[...], cw_ref[...], preferred_element_type=jnp.float32)
            + cb_ref[...], 0.0)                                   # (T_union*R, DP)
        pooled = conv[0:R]                                        # max over time
        for t in range(1, T_union):
            blk = conv[t * R:(t + 1) * R]
            if t >= T_full:                                       # partial windows:
                blk = blk * tmask_ref[t:t + 1, :]                 # mask (relu >= 0)
            pooled = jnp.maximum(pooled, blk)
        # node-type embed occupies lanes [0:E_nt), char feats [E_nt:D), zeros beyond.
        h = ntype_ref[...] + pooled                               # (R, DP)

        # ----- gated R-GCN layers: relu(msg+b) * sigmoid(gate+bg) + skip -----
        for l in range(n_layers):
            # per-edge-type projection (msg|gate in separate 128-lane tiles),
            # written at sublane offsets e*R into the stacked VMEM scratch.
            for e in range(net):
                stacked_ref[e * R:(e + 1) * R, :] = jnp.dot(
                    h, gw_ref[l * net + e], preferred_element_type=jnp.float32)
            # ONE aggregation matmul for the whole batch (block-diagonal adjacency).
            mg = jnp.dot(adj_ref[...], stacked_ref[...],
                         preferred_element_type=jnp.float32) + gb_ref[l]   # (R, 2*DP)
            h = (jnp.maximum(mg[:, 0:DP], 0.0)
                 * jax.nn.sigmoid(mg[:, DP:2 * DP]) + h)          # gcn skip connections

        # ----- readout: linear node projection + subgraph mean pooling -----
        proj = jnp.dot(h, ow_ref[...], preferred_element_type=jnp.float32) + ob_ref[...]
        o_ref[...] = jnp.dot(memb_ref[...], proj,
                             preferred_element_type=jnp.float32).astype(o_ref.dtype)

    return kernel


def fused_graph_forward(cols, ntype_pad, adj_bd, memb,
                        cw_fused, cb_fused, tmask,
                        gw_all, gb_all, ow_pad, ob,
                        *, B, N, L, widths, n_edge_types, n_layers):
    d_pad = ntype_pad.shape[-1]
    d_out = ow_pad.shape[-1]
    R = B * N
    kernel = make_fused_kernel(B=B, N=N, L=L, widths=widths,
                               n_edge_types=n_edge_types, d_pad=d_pad,
                               n_layers=n_layers)
    vmem = pl.BlockSpec(memory_space=pltpu.MemorySpace.VMEM)
    return pl.pallas_call(
        kernel,
        out_shape=jax.ShapeDtypeStruct((memb.shape[0], d_out), jnp.float32),
        in_specs=[vmem] * 11,
        out_specs=vmem,
        scratch_shapes=[pltpu.VMEM((n_edge_types * R, 2 * d_pad), jnp.float32)],
    )(cols, ntype_pad, adj_bd, memb, cw_fused, cb_fused, tmask,
      gw_all, gb_all, ow_pad, ob)


if __name__ == "__main__":
    # -------- model configuration (small, consistent with module __init__) --------
    B, N, L = 2, 8, 8                 # batch, max_num_nodes, chars per node name
    NUM_CHARS, CHAR_E = 20, 8         # num_chars, node_char_embedding_size
    CHAR_FILTERS = ((2, 8), (3, 8))   # char_filters: (width, num_filters)
    NODE_TYPE_E = 8                   # node_type_embedding_size
    NUM_NODE_TYPES = 6
    NUM_EDGE_TYPES = 3
    SELF_LOOP_ID = 2
    CLAUSE_IN = NODE_TYPE_E + sum(f for _, f in CHAR_FILTERS)   # conv_input_size = 24
    GRAPH_OUT = 16                    # graph_embedding_output_size
    NUM_GCN_LAYERS = 2                # num_gcn_conv_layers
    S = 3                             # num_subgraphs per batch element
    NUM_ACTION_TYPES, ACT_E = 5, 8
    PAD_IDX = 0
    R = B * N
    D_PAD = LANE
    assert CLAUSE_IN <= D_PAD

    key = jax.random.PRNGKey(0)
    keys = iter(jax.random.split(key, 40))

    def param(shape, scale=0.1):
        return scale * jax.random.normal(next(keys), shape, jnp.float32)

    # -------- deterministic parameters (pad rows zeroed, like pad_idx=0) --------
    char_table = param((NUM_CHARS, CHAR_E)).at[PAD_IDX].set(0.0)
    node_type_table = param((NUM_NODE_TYPES, NODE_TYPE_E)).at[PAD_IDX].set(0.0)
    act_table = param((NUM_ACTION_TYPES, ACT_E)).at[PAD_IDX].set(0.0)

    widths = tuple(w for w, _ in CHAR_FILTERS)
    conv_ws = [param((w, CHAR_E, f)) for w, f in CHAR_FILTERS]
    conv_bs = [param((1, f)) for _, f in CHAR_FILTERS]

    gcn_ws = [param((NUM_EDGE_TYPES, CLAUSE_IN, CLAUSE_IN)) for _ in range(NUM_GCN_LAYERS)]
    gcn_wgs = [param((NUM_EDGE_TYPES, CLAUSE_IN, CLAUSE_IN)) for _ in range(NUM_GCN_LAYERS)]
    gcn_bs = [param((1, CLAUSE_IN)) for _ in range(NUM_GCN_LAYERS)]
    gcn_bgs = [param((1, CLAUSE_IN)) for _ in range(NUM_GCN_LAYERS)]

    out_w = param((CLAUSE_IN, GRAPH_OUT))
    out_b = param((1, GRAPH_OUT))

    # -------- pack-time layout transforms (pure layout, done once) --------
    w_max, w_min = max(widths), min(widths)
    T_union = L - w_min + 1

    # Fused CharCNN weight (w_max*E, D_PAD): filter i uses rows [0, w_i*E) and lane
    # columns [NODE_TYPE_E+off_i, NODE_TYPE_E+off_i+F_i); missing-tap rows and all
    # other columns are zero, so the conv matmul writes the char-feature block at its
    # final lane position inside the 128-lane node feature.
    cw_fused = jnp.zeros((w_max * CHAR_E, D_PAD), jnp.float32)
    cb_fused = jnp.zeros((1, D_PAD), jnp.float32)
    tmask = jnp.zeros((T_union, D_PAD), jnp.float32)
    col = NODE_TYPE_E
    for i, (w, F) in enumerate(CHAR_FILTERS):
        cw_fused = cw_fused.at[0:w * CHAR_E, col:col + F].set(
            conv_ws[i].reshape(w * CHAR_E, F))
        cb_fused = cb_fused.at[:, col:col + F].set(conv_bs[i])
        valid = (jnp.arange(T_union) <= (L - w)).astype(jnp.float32)
        tmask = tmask.at[:, col:col + F].set(valid[:, None])
        col += F

    # Per-layer, per-edge-type fused (msg|gate) weights, zero-padded so msg occupies
    # lane tile [0, D_PAD) and gate lane tile [D_PAD, 2*D_PAD): all in-kernel column
    # slices are 128-lane-tile-aligned views.
    gw_all = jnp.zeros((NUM_GCN_LAYERS * NUM_EDGE_TYPES, D_PAD, 2 * D_PAD), jnp.float32)
    gb_all = jnp.zeros((NUM_GCN_LAYERS, 1, 2 * D_PAD), jnp.float32)
    for l in range(NUM_GCN_LAYERS):
        for e in range(NUM_EDGE_TYPES):
            gw_all = gw_all.at[l * NUM_EDGE_TYPES + e,
                               0:CLAUSE_IN, 0:CLAUSE_IN].set(gcn_ws[l][e])
            gw_all = gw_all.at[l * NUM_EDGE_TYPES + e,
                               0:CLAUSE_IN, D_PAD:D_PAD + CLAUSE_IN].set(gcn_wgs[l][e])
        gb_all = gb_all.at[l, :, 0:CLAUSE_IN].set(gcn_bs[l])
        gb_all = gb_all.at[l, :, D_PAD:D_PAD + CLAUSE_IN].set(gcn_bgs[l])

    ow_pad = jnp.zeros((D_PAD, GRAPH_OUT), jnp.float32).at[0:CLAUSE_IN, :].set(out_w)
    ob = out_b

    # -------- deterministic example inputs --------
    batch_nodes = jax.random.randint(next(keys), (B, N), 1, NUM_NODE_TYPES)
    batch_node_chars = jax.random.randint(next(keys), (B * N, L), 1, NUM_CHARS)
    action_types = jax.random.randint(next(keys), (B,), 1, NUM_ACTION_TYPES)

    # adjacency tuples: columns [batch, src, edge_type, dst, depth]
    num_rand_edges = 24
    eb = jax.random.randint(next(keys), (num_rand_edges,), 0, B)
    esrc = jax.random.randint(next(keys), (num_rand_edges,), 0, N)
    edst = jax.random.randint(next(keys), (num_rand_edges,), 0, N)
    eet = jax.random.randint(next(keys), (num_rand_edges,), 0, SELF_LOOP_ID)
    edep = jax.random.randint(next(keys), (num_rand_edges,), 0, 5)
    rand_edges = jnp.stack([eb, esrc, eet, edst, edep], axis=1)
    sb = jnp.repeat(jnp.arange(B), N)
    sn = jnp.tile(jnp.arange(N), B)
    self_edges = jnp.stack(
        [sb, sn, jnp.full_like(sb, SELF_LOOP_ID), sn, jnp.zeros_like(sb)], axis=1)
    batch_adj_tuples = jnp.concatenate([rand_edges, self_edges], axis=0)      # (40, 5)

    # subgraph membership tuples: columns [batch, subgraph, node]
    batch_subgraph_members = jnp.stack([sb, sn % S, sn], axis=1)              # (B*N, 3)

    # im2col window index (time-major): row t*R + r of cols holds chars[r, t:t+w_max]
    t_idx = jnp.arange(T_union)[:, None] + jnp.arange(w_max)[None, :]         # (Tu, w_max)

    # -------- forward --------
    @jax.jit
    def forward(batch_nodes, batch_adj_tuples, batch_subgraph_members,
                action_types, batch_node_chars):
        # embedding gathers + im2col window gather + sparse->dense scatters are XLA
        # wrapper glue; the whole hot path (CharCNN -> GCN layers -> readout) is a
        # single fused Pallas kernel with no in-kernel relayout work.
        chars_pad = jnp.pad(batch_node_chars, ((0, 0), (0, w_max - 1)),
                            constant_values=PAD_IDX)              # pad_idx row is zero
        win_ids = jnp.transpose(chars_pad[:, t_idx], (1, 0, 2))   # (T_union, R, w_max)
        cols = char_table[win_ids].reshape(T_union * R, w_max * CHAR_E)

        ntype = node_type_table[batch_nodes].reshape(R, NODE_TYPE_E)
        ntype_pad = jnp.zeros((R, D_PAD), jnp.float32).at[:, 0:NODE_TYPE_E].set(ntype)

        # block-diagonal per-edge-type adjacency: adj_bd[b*N+dst, e*R + b*N+src] = 1
        adj_bd = jnp.zeros((R, NUM_EDGE_TYPES * R), jnp.float32).at[
            batch_adj_tuples[:, 0] * N + batch_adj_tuples[:, 3],
            batch_adj_tuples[:, 2] * R + batch_adj_tuples[:, 0] * N
            + batch_adj_tuples[:, 1]].set(1.0)
        # TODO(synk): .set collapses duplicate edges; use .add if ComposeGCN sums them.

        # block-diagonal, row-normalized subgraph mean-pool matrix (B*S, B*N)
        memb = jnp.zeros((B * S, R), jnp.float32).at[
            batch_subgraph_members[:, 0] * S + batch_subgraph_members[:, 1],
            batch_subgraph_members[:, 0] * N + batch_subgraph_members[:, 2]].set(1.0)
        memb = memb / jnp.clip(memb.sum(-1, keepdims=True), 1.0)

        graph_flat = fused_graph_forward(
            cols, ntype_pad, adj_bd, memb, cw_fused, cb_fused, tmask,
            gw_all, gb_all, ow_pad, ob,
            B=B, N=N, L=L, widths=widths, n_edge_types=NUM_EDGE_TYPES,
            n_layers=NUM_GCN_LAYERS)
        graph_embed = graph_flat.reshape(B, S, GRAPH_OUT)

        act_embed = act_table[action_types]                        # (B, ACT_E)
        return graph_embed, act_embed

    graph_embed, act_embed = forward(batch_nodes, batch_adj_tuples,
                                     batch_subgraph_members, action_types,
                                     batch_node_chars)
    jax.block_until_ready(graph_embed)
    jax.block_until_ready(act_embed)
    assert graph_embed.shape == (B, S, GRAPH_OUT)
    assert act_embed.shape == (B, ACT_E)
    print("KERNEL_OK")
</pallas_src>

<mosaic_0001>
module attributes {stable_mosaic.version = 11 : i64} {
  func.func @kernel(%arg0: memref<112x24xf32, #tpu.memory_space<vmem>>, %arg1: memref<16x128xf32, #tpu.memory_space<vmem>>, %arg2: memref<16x48xf32, #tpu.memory_space<vmem>>, %arg3: memref<6x16xf32, #tpu.memory_space<vmem>>, %arg4: memref<24x128xf32, #tpu.memory_space<vmem>>, %arg5: memref<1x128xf32, #tpu.memory_space<vmem>>, %arg6: memref<7x128xf32, #tpu.memory_space<vmem>>, %arg7: memref<6x128x256xf32, #tpu.memory_space<vmem>>, %arg8: memref<2x1x256xf32, #tpu.memory_space<vmem>>, %arg9: memref<128x16xf32, #tpu.memory_space<vmem>>, %arg10: memref<1x16xf32, #tpu.memory_space<vmem>>, %arg11: memref<6x16xf32, #tpu.memory_space<vmem>>, %arg12: memref<48x256xf32, #tpu.memory_space<vmem>>) attributes {dimension_semantics = [], scalar_prefetch = 0 : i64, scratch_operands = 1 : i64, tpu.core_type = #tpu.core_type<tc>} {
    %c0 = arith.constant 0 : index
    %c0_0 = arith.constant 0 : index
    %0 = vector.load %arg0[%c0, %c0_0] : memref<112x24xf32, #tpu.memory_space<vmem>>, vector<112x24xf32>
    %c0_1 = arith.constant 0 : index
    %c0_2 = arith.constant 0 : index
    %1 = vector.load %arg4[%c0_1, %c0_2] : memref<24x128xf32, #tpu.memory_space<vmem>>, vector<24x128xf32>
    %cst = arith.constant dense<0.000000e+00> : vector<112x128xf32>
    %2 = tpu.matmul %0, %1, %cst {dimension_numbers = #tpu.dot_dimension_numbers<[1], [0], [0], [1], [0, 0, 1, 1], [], []>} : vector<112x24xf32>, vector<24x128xf32>, vector<112x128xf32> -> vector<112x128xf32>
    %c0_3 = arith.constant 0 : index
    %c0_4 = arith.constant 0 : index
    %3 = vector.load %arg5[%c0_3, %c0_4] : memref<1x128xf32, #tpu.memory_space<vmem>>, vector<1x128xf32>
    %4 = vector.broadcast %3 : vector<1x128xf32> to vector<112x128xf32>
    %5 = arith.addf %2, %4 : vector<112x128xf32>
    %cst_5 = arith.constant 0.000000e+00 : f32
    %6 = vector.broadcast %cst_5 : f32 to vector<112x128xf32>
    %7 = arith.maximumf %5, %6 : vector<112x128xf32>
    %8 = vector.extract_strided_slice %7 {offsets = [0, 0], sizes = [16, 128], strides = [1, 1]} : vector<112x128xf32> to vector<16x128xf32>
    %9 = vector.extract_strided_slice %7 {offsets = [16, 0], sizes = [16, 128], strides = [1, 1]} : vector<112x128xf32> to vector<16x128xf32>
    %10 = arith.maximumf %8, %9 : vector<16x128xf32>
    %11 = vector.extract_strided_slice %7 {offsets = [32, 0], sizes = [16, 128], strides = [1, 1]} : vector<112x128xf32> to vector<16x128xf32>
    %12 = arith.maximumf %10, %11 : vector<16x128xf32>
    %13 = vector.extract_strided_slice %7 {offsets = [48, 0], sizes = [16, 128], strides = [1, 1]} : vector<112x128xf32> to vector<16x128xf32>
    %14 = arith.maximumf %12, %13 : vector<16x128xf32>
    %15 = vector.extract_strided_slice %7 {offsets = [64, 0], sizes = [16, 128], strides = [1, 1]} : vector<112x128xf32> to vector<16x128xf32>
    %16 = arith.maximumf %14, %15 : vector<16x128xf32>
    %17 = vector.extract_strided_slice %7 {offsets = [80, 0], sizes = [16, 128], strides = [1, 1]} : vector<112x128xf32> to vector<16x128xf32>
    %18 = arith.maximumf %16, %17 : vector<16x128xf32>
    %19 = vector.extract_strided_slice %7 {offsets = [96, 0], sizes = [16, 128], strides = [1, 1]} : vector<112x128xf32> to vector<16x128xf32>
    %c6 = arith.constant 6 : index
    %c0_6 = arith.constant 0 : index
    %20 = vector.load %arg6[%c6, %c0_6] : memref<7x128xf32, #tpu.memory_space<vmem>>, vector<1x128xf32>
    %21 = vector.broadcast %20 : vector<1x128xf32> to vector<16x128xf32>
    %22 = arith.mulf %19, %21 : vector<16x128xf32>
    %23 = arith.maximumf %18, %22 : vector<16x128xf32>
    %c0_7 = arith.constant 0 : index
    %c0_8 = arith.constant 0 : index
    %24 = vector.load %arg1[%c0_7, %c0_8] : memref<16x128xf32, #tpu.memory_space<vmem>>, vector<16x128xf32>
    %25 = arith.addf %24, %23 : vector<16x128xf32>
    %c0_9 = arith.constant 0 : index
    %c0_10 = arith.constant 0 : index
    %c0_11 = arith.constant 0 : index
    %26 = vector.load %arg7[%c0_9, %c0_10, %c0_11] : memref<6x128x256xf32, #tpu.memory_space<vmem>>, vector<1x128x256xf32>
    %27 = vector.shape_cast %26 : vector<1x128x256xf32> to vector<128x256xf32>
    %cst_12 = arith.constant dense<0.000000e+00> : vector<16x256xf32>
    %28 = tpu.matmul %25, %27, %cst_12 {dimension_numbers = #tpu.dot_dimension_numbers<[1], [0], [0], [1], [0, 0, 1, 1], [], []>} : vector<16x128xf32>, vector<128x256xf32>, vector<16x256xf32> -> vector<16x256xf32>
    %c0_13 = arith.constant 0 : index
    %c0_14 = arith.constant 0 : index
    %29 = vector.load %arg12[%c0_13, %c0_14] : memref<48x256xf32, #tpu.memory_space<vmem>>, vector<16x256xf32>
    tpu.vector_store %arg12[%c0_13, %c0_14], %28 {strides = array<i32>} : memref<48x256xf32, #tpu.memory_space<vmem>>, vector<16x256xf32>,
    %c1 = arith.constant 1 : index
    %c0_15 = arith.constant 0 : index
    %c0_16 = arith.constant 0 : index
    %30 = vector.load %arg7[%c1, %c0_15, %c0_16] : memref<6x128x256xf32, #tpu.memory_space<vmem>>, vector<1x128x256xf32>
    %31 = vector.shape_cast %30 : vector<1x128x256xf32> to vector<128x256xf32>
    %cst_17 = arith.constant dense<0.000000e+00> : vector<16x256xf32>
    %32 = tpu.matmul %25, %31, %cst_17 {dimension_numbers = #tpu.dot_dimension_numbers<[1], [0], [0], [1], [0, 0, 1, 1], [], []>} : vector<16x128xf32>, vector<128x256xf32>, vector<16x256xf32> -> vector<16x256xf32>
    %c16 = arith.constant 16 : index
    %c0_18 = arith.constant 0 : index
    %33 = vector.load %arg12[%c16, %c0_18] : memref<48x256xf32, #tpu.memory_space<vmem>>, vector<16x256xf32>
    tpu.vector_store %arg12[%c16, %c0_18], %32 {strides = array<i32>} : memref<48x256xf32, #tpu.memory_space<vmem>>, vector<16x256xf32>,
    %c2 = arith.constant 2 : index
    %c0_19 = arith.constant 0 : index
    %c0_20 = arith.constant 0 : index
    %34 = vector.load %arg7[%c2, %c0_19, %c0_20] : memref<6x128x256xf32, #tpu.memory_space<vmem>>, vector<1x128x256xf32>
    %35 = vector.shape_cast %34 : vector<1x128x256xf32> to vector<128x256xf32>
    %cst_21 = arith.constant dense<0.000000e+00> : vector<16x256xf32>
    %36 = tpu.matmul %25, %35, %cst_21 {dimension_numbers = #tpu.dot_dimension_numbers<[1], [0], [0], [1], [0, 0, 1, 1], [], []>} : vector<16x128xf32>, vector<128x256xf32>, vector<16x256xf32> -> vector<16x256xf32>
    %c32 = arith.constant 32 : index
    %c0_22 = arith.constant 0 : index
    %37 = vector.load %arg12[%c32, %c0_22] : memref<48x256xf32, #tpu.memory_space<vmem>>, vector<16x256xf32>
    tpu.vector_store %arg12[%c32, %c0_22], %36 {strides = array<i32>} : memref<48x256xf32, #tpu.memory_space<vmem>>, vector<16x256xf32>,
    %c0_23 = arith.constant 0 : index
    %c0_24 = arith.constant 0 : index
    %38 = vector.load %arg2[%c0_23, %c0_24] : memref<16x48xf32, #tpu.memory_space<vmem>>, vector<16x48xf32>
    %c0_25 = arith.constant 0 : index
    %c0_26 = arith.constant 0 : index
    %39 = vector.load %arg12[%c0_25, %c0_26] : memref<48x256xf32, #tpu.memory_space<vmem>>, vector<48x256xf32>
    %cst_27 = arith.constant dense<0.000000e+00> : vector<16x256xf32>
    %40 = tpu.matmul %38, %39, %cst_27 {dimension_numbers = #tpu.dot_dimension_numbers<[1], [0], [0], [1], [0, 0, 1, 1], [], []>} : vector<16x48xf32>, vector<48x256xf32>, vector<16x256xf32> -> vector<16x256xf32>
    %c0_28 = arith.constant 0 : index
    %c0_29 = arith.constant 0 : index
    %c0_30 = arith.constant 0 : index
    %41 = vector.load %arg8[%c0_28, %c0_29, %c0_30] : memref<2x1x256xf32, #tpu.memory_space<vmem>>, vector<1x1x256xf32>
    %42 = vector.shape_cast %41 : vector<1x1x256xf32> to vector<1x256xf32>
    %43 = vector.broadcast %42 : vector<1x256xf32> to vector<16x256xf32>
    %44 = arith.addf %40, %43 : vector<16x256xf32>
    %45 = vector.extract_strided_slice %44 {offsets = [0, 0], sizes = [16, 128], strides = [1, 1]} : vector<16x256xf32> to vector<16x128xf32>
    %cst_31 = arith.constant 0.000000e+00 : f32
    %46 = vector.broadcast %cst_31 : f32 to vector<16x128xf32>
    %47 = arith.maximumf %45, %46 : vector<16x128xf32>
    %48 = vector.extract_strided_slice %44 {offsets = [0, 128], sizes = [16, 128], strides = [1, 1]} : vector<16x256xf32> to vector<16x128xf32>
    %49 = arith.negf %48 : vector<16x128xf32>
    %50 = math.exp %49 : vector<16x128xf32>
    %cst_32 = arith.constant 1.000000e+00 : f32
    %51 = vector.broadcast %cst_32 : f32 to vector<16x128xf32>
    %52 = arith.addf %51, %50 : vector<16x128xf32>
    %53 = arith.divf %51, %52 : vector<16x128xf32>
    %54 = arith.mulf %47, %53 : vector<16x128xf32>
    %55 = arith.addf %54, %25 : vector<16x128xf32>
    %c3 = arith.constant 3 : index
    %c0_33 = arith.constant 0 : index
    %c0_34 = arith.constant 0 : index
    %56 = vector.load %arg7[%c3, %c0_33, %c0_34] : memref<6x128x256xf32, #tpu.memory_space<vmem>>, vector<1x128x256xf32>
    %57 = vector.shape_cast %56 : vector<1x128x256xf32> to vector<128x256xf32>
    %cst_35 = arith.constant dense<0.000000e+00> : vector<16x256xf32>
    %58 = tpu.matmul %55, %57, %cst_35 {dimension_numbers = #tpu.dot_dimension_numbers<[1], [0], [0], [1], [0, 0, 1, 1], [], []>} : vector<16x128xf32>, vector<128x256xf32>, vector<16x256xf32> -> vector<16x256xf32>
    %c0_36 = arith.constant 0 : index
    %c0_37 = arith.constant 0 : index
    %59 = vector.load %arg12[%c0_36, %c0_37] : memref<48x256xf32, #tpu.memory_space<vmem>>, vector<16x256xf32>
    tpu.vector_store %arg12[%c0_36, %c0_37], %58 {strides = array<i32>} : memref<48x256xf32, #tpu.memory_space<vmem>>, vector<16x256xf32>,
    %c4 = arith.constant 4 : index
    %c0_38 = arith.constant 0 : index
    %c0_39 = arith.constant 0 : index
    %60 = vector.load %arg7[%c4, %c0_38, %c0_39] : memref<6x128x256xf32, #tpu.memory_space<vmem>>, vector<1x128x256xf32>
    %61 = vector.shape_cast %60 : vector<1x128x256xf32> to vector<128x256xf32>
    %cst_40 = arith.constant dense<0.000000e+00> : vector<16x256xf32>
    %62 = tpu.matmul %55, %61, %cst_40 {dimension_numbers = #tpu.dot_dimension_numbers<[1], [0], [0], [1], [0, 0, 1, 1], [], []>} : vector<16x128xf32>, vector<128x256xf32>, vector<16x256xf32> -> vector<16x256xf32>
    %c16_41 = arith.constant 16 : index
    %c0_42 = arith.constant 0 : index
    %63 = vector.load %arg12[%c16_41, %c0_42] : memref<48x256xf32, #tpu.memory_space<vmem>>, vector<16x256xf32>
    tpu.vector_store %arg12[%c16_41, %c0_42], %62 {strides = array<i32>} : memref<48x256xf32, #tpu.memory_space<vmem>>, vector<16x256xf32>,
    %c5 = arith.constant 5 : index
    %c0_43 = arith.constant 0 : index
    %c0_44 = arith.constant 0 : index
    %64 = vector.load %arg7[%c5, %c0_43, %c0_44] : memref<6x128x256xf32, #tpu.memory_space<vmem>>, vector<1x128x256xf32>
    %65 = vector.shape_cast %64 : vector<1x128x256xf32> to vector<128x256xf32>
    %cst_45 = arith.constant dense<0.000000e+00> : vector<16x256xf32>
    %66 = tpu.matmul %55, %65, %cst_45 {dimension_numbers = #tpu.dot_dimension_numbers<[1], [0], [0], [1], [0, 0, 1, 1], [], []>} : vector<16x128xf32>, vector<128x256xf32>, vector<16x256xf32> -> vector<16x256xf32>
    %c32_46 = arith.constant 32 : index
    %c0_47 = arith.constant 0 : index
    %67 = vector.load %arg12[%c32_46, %c0_47] : memref<48x256xf32, #tpu.memory_space<vmem>>, vector<16x256xf32>
    tpu.vector_store %arg12[%c32_46, %c0_47], %66 {strides = array<i32>} : memref<48x256xf32, #tpu.memory_space<vmem>>, vector<16x256xf32>,
    %c0_48 = arith.constant 0 : index
    %c0_49 = arith.constant 0 : index
    %68 = vector.load %arg2[%c0_48, %c0_49] : memref<16x48xf32, #tpu.memory_space<vmem>>, vector<16x48xf32>
    %c0_50 = arith.constant 0 : index
    %c0_51 = arith.constant 0 : index
    %69 = vector.load %arg12[%c0_50, %c0_51] : memref<48x256xf32, #tpu.memory_space<vmem>>, vector<48x256xf32>
    %cst_52 = arith.constant dense<0.000000e+00> : vector<16x256xf32>
    %70 = tpu.matmul %68, %69, %cst_52 {dimension_numbers = #tpu.dot_dimension_numbers<[1], [0], [0], [1], [0, 0, 1, 1], [], []>} : vector<16x48xf32>, vector<48x256xf32>, vector<16x256xf32> -> vector<16x256xf32>
    %c1_53 = arith.constant 1 : index
    %c0_54 = arith.constant 0 : index
    %c0_55 = arith.constant 0 : index
    %71 = vector.load %arg8[%c1_53, %c0_54, %c0_55] : memref<2x1x256xf32, #tpu.memory_space<vmem>>, vector<1x1x256xf32>
    %72 = vector.shape_cast %71 : vector<1x1x256xf32> to vector<1x256xf32>
    %73 = vector.broadcast %72 : vector<1x256xf32> to vector<16x256xf32>
    %74 = arith.addf %70, %73 : vector<16x256xf32>
    %75 = vector.extract_strided_slice %74 {offsets = [0, 0], sizes = [16, 128], strides = [1, 1]} : vector<16x256xf32> to vector<16x128xf32>
    %cst_56 = arith.constant 0.000000e+00 : f32
    %76 = vector.broadcast %cst_56 : f32 to vector<16x128xf32>
    %77 = arith.maximumf %75, %76 : vector<16x128xf32>
    %78 = vector.extract_strided_slice %74 {offsets = [0, 128], sizes = [16, 128], strides = [1, 1]} : vector<16x256xf32> to vector<16x128xf32>
    %79 = arith.negf %78 : vector<16x128xf32>
    %80 = math.exp %79 : vector<16x128xf32>
    %cst_57 = arith.constant 1.000000e+00 : f32
    %81 = vector.broadcast %cst_57 : f32 to vector<16x128xf32>
    %82 = arith.addf %81, %80 : vector<16x128xf32>
    %83 = arith.divf %81, %82 : vector<16x128xf32>
    %84 = arith.mulf %77, %83 : vector<16x128xf32>
    %85 = arith.addf %84, %55 : vector<16x128xf32>
    %c0_58 = arith.constant 0 : index
    %c0_59 = arith.constant 0 : index
    %86 = vector.load %arg9[%c0_58, %c0_59] : memref<128x16xf32, #tpu.memory_space<vmem>>, vector<128x16xf32>
    %cst_60 = arith.constant dense<0.000000e+00> : vector<16x16xf32>
    %87 = tpu.matmul %85, %86, %cst_60 {dimension_numbers = #tpu.dot_dimension_numbers<[1], [0], [0], [1], [0, 0, 1, 1], [], []>} : vector<16x128xf32>, vector<128x16xf32>, vector<16x16xf32> -> vector<16x16xf32>
    %c0_61 = arith.constant 0 : index
    %c0_62 = arith.constant 0 : index
    %88 = vector.load %arg10[%c0_61, %c0_62] : memref<1x16xf32, #tpu.memory_space<vmem>>, vector<1x16xf32>
    %89 = vector.broadcast %88 : vector<1x16xf32> to vector<16x16xf32>
    %90 = arith.addf %87, %89 : vector<16x16xf32>
    %c0_63 = arith.constant 0 : index
    %c0_64 = arith.constant 0 : index
    %91 = vector.load %arg3[%c0_63, %c0_64] : memref<6x16xf32, #tpu.memory_space<vmem>>, vector<6x16xf32>
    %cst_65 = arith.constant dense<0.000000e+00> : vector<6x16xf32>
    %92 = tpu.matmul %91, %90, %cst_65 {dimension_numbers = #tpu.dot_dimension_numbers<[1], [0], [0], [1], [0, 0, 1, 1], [], []>} : vector<6x16xf32>, vector<16x16xf32>, vector<6x16xf32> -> vector<6x16xf32>
    %c0_66 = arith.constant 0 : index
    %c0_67 = arith.constant 0 : index
    %93 = vector.load %arg11[%c0_66, %c0_67] : memref<6x16xf32, #tpu.memory_space<vmem>>, vector<6x16xf32>
    tpu.vector_store %arg11[%c0_66, %c0_67], %92 {strides = array<i32>} : memref<6x16xf32, #tpu.memory_space<vmem>>, vector<6x16xf32>,
    return
  }
}

</mosaic_0001>

<llo_original>
// kernel: forward.1
$region0: #{forward.1}
  #allocation0 [shape = 'u32[]', space=smem, size = 0x4, offset = 0x4, fixed_abs, tag = 'smem constant byte address 0x4 - core index']
  #allocation1 [shape = 'u32[144,128]{1,0:T(1,128)}', space=vmem, size = 0x12000, scoped, tag = 'internal scratch']
  #allocation2 [shape = 'f32[48,256]{1,0:T(8,128)}', space=vmem, size = 0xc000, scoped, tag = 'scratch operand']
  %s0 = inlined_call_operand.vmem [shape: f32[112,24], index: 0, kind: input, shape index: {}]
  %s1 = inlined_call_operand.vmem [shape: f32[16,128], index: 1, kind: input, shape index: {}]
  %s2 = inlined_call_operand.vmem [shape: f32[16,48], index: 2, kind: input, shape index: {}]
  %s3 = inlined_call_operand.vmem [shape: f32[6,16], index: 3, kind: input, shape index: {}]
  %s4 = inlined_call_operand.vmem [shape: f32[24,128], index: 4, kind: input, shape index: {}]
  %s5 = inlined_call_operand.vmem [shape: f32[1,128], index: 5, kind: input, shape index: {}]
  %s6 = inlined_call_operand.vmem [shape: f32[7,128], index: 6, kind: input, shape index: {}]
  %s7 = inlined_call_operand.vmem [shape: f32[6,128,256], index: 7, kind: input, shape index: {}]
  %s8 = inlined_call_operand.vmem [shape: f32[2,1,256], index: 8, kind: input, shape index: {}]
  %s9 = inlined_call_operand.vmem [shape: f32[128,16], index: 9, kind: input, shape index: {}]
  %s10 = inlined_call_operand.vmem [shape: f32[1,16], index: 10, kind: input, shape index: {}]
  %s11 = inlined_call_operand.vmem [shape: f32[6,16], index: 11, kind: output, shape index: {}]
  %s12 = sld [smem:[#allocation0]]
  $region54: #{forward.1} parent=0
    _
  %s14 = ssub.s32 1, %s12
  %s15 = scalar_select 0, %s14, %s12
  // Predicated region
  $region2: #{forward.1} parent=0 // pred_check
    _
  $region3: #{forward.1} parent=0 // pred_check_branch
    %17 = sbr.rel (0) target = $region5
  $region4: #{forward.1} parent=0 // pred_region
    _
  $region5: #{forward.1} parent=0 // pred_fallthru
    _
  // Predicated region
  $region6: #{forward.1} parent=0 // pred_check
    _
  $region7: #{forward.1} parent=0 // pred_check_branch
    %19 = sbr.rel (0) target = $region9
  $region8: #{forward.1} parent=0 // pred_region
    _
  $region9: #{forward.1} parent=0 // pred_fallthru
    _
  // Predicated region
  $region10: #{forward.1} parent=0 // pred_check
    _
  $region11: #{forward.1} parent=0 // pred_check_branch
    %21 = sbr.rel (0) target = $region13
  $region12: #{forward.1} parent=0 // pred_region
    _
  $region13: #{forward.1} parent=0 // pred_fallthru
    _
  // Predicated region
  $region14: #{forward.1} parent=0 // pred_check
    _
  $region15: #{forward.1} parent=0 // pred_check_branch
    %23 = sbr.rel (0) target = $region17
  $region16: #{forward.1} parent=0 // pred_region
    _
  $region17: #{forward.1} parent=0 // pred_fallthru
    _
  // Predicated region
  $region18: #{forward.1} parent=0 // pred_check
    _
  $region19: #{forward.1} parent=0 // pred_check_branch
    %25 = sbr.rel (0) target = $region21
  $region20: #{forward.1} parent=0 // pred_region
    _
  $region21: #{forward.1} parent=0 // pred_fallthru
    _
  // Predicated region
  $region22: #{forward.1} parent=0 // pred_check
    _
  $region23: #{forward.1} parent=0 // pred_check_branch
    %27 = sbr.rel (0) target = $region25
  $region24: #{forward.1} parent=0 // pred_region
    _
  $region25: #{forward.1} parent=0 // pred_fallthru
    _
  // Predicated region
  $region26: #{forward.1} parent=0 // pred_check
    _
  $region27: #{forward.1} parent=0 // pred_check_branch
    %29 = sbr.rel (0) target = $region29
  $region28: #{forward.1} parent=0 // pred_region
    _
  $region29: #{forward.1} parent=0 // pred_fallthru
    _
  // Predicated region
  $region30: #{forward.1} parent=0 // pred_check
    _
  $region31: #{forward.1} parent=0 // pred_check_branch
    %31 = sbr.rel (0) target = $region33
  $region32: #{forward.1} parent=0 // pred_region
    _
  $region33: #{forward.1} parent=0 // pred_fallthru
    _
  // Predicated region
  $region34: #{forward.1} parent=0 // pred_check
    _
  $region35: #{forward.1} parent=0 // pred_check_branch
    %33 = sbr.rel (0) target = $region37
  $region36: #{forward.1} parent=0 // pred_region
    _
  $region37: #{forward.1} parent=0 // pred_fallthru
    _
  // Predicated region
  $region38: #{forward.1} parent=0 // pred_check
    _
  $region39: #{forward.1} parent=0 // pred_check_branch
    %35 = sbr.rel (0) target = $region41
  $region40: #{forward.1} parent=0 // pred_region
    _
  $region41: #{forward.1} parent=0 // pred_fallthru
    _
  // Predicated region
  $region42: #{forward.1} parent=0 // pred_check
    _
  $region43: #{forward.1} parent=0 // pred_check_branch
    %37 = sbr.rel (0) target = $region45
  $region44: #{forward.1} parent=0 // pred_region
    _
  $region45: #{forward.1} parent=0 // pred_fallthru
    _
  %v38 = vld [vmem:[%s0] sm:$0xff]
  %v39 = vld [vmem:[%s0 + $0x8] sm:$0xff]
  %v40 = vld [vmem:[%s0 + $0x10] sm:$0xff]
  %v41 = vld [vmem:[%s0 + $0x18] sm:$0xff]
  %v42 = vld [vmem:[%s0 + $0x20] sm:$0xff]
  %v43 = vld [vmem:[%s0 + $0x28] sm:$0xff]
  %v44 = vld [vmem:[%s0 + $0x30] sm:$0xff]
  %v45 = vld [vmem:[%s0 + $0x38] sm:$0xff]
  %v46 = vld [vmem:[%s0 + $0x40] sm:$0xff]
  %v47 = vld [vmem:[%s0 + $0x48] sm:$0xff]
  %v48 = vld [vmem:[%s0 + $0x50] sm:$0xff]
  %v49 = vld [vmem:[%s0 + $0x58] sm:$0xff]
  %v50 = vld [vmem:[%s0 + $0x60] sm:$0xff]
  %v51 = vld [vmem:[%s0 + $0x68] sm:$0xff]
  %v52 = vld [vmem:[%s4] sm:$0xff]
  %v53 = vld [vmem:[%s4 + $0x8] sm:$0xff]
  %v54 = vld [vmem:[%s4 + $0x10] sm:$0xff]
  %v55 = vld [vmem:[%s5] sm:$0x1]
  %v57 = vlaneseq
  %v58 = vshrl.u32 %v57, 7
  %v59 = vsub.s32 0, %v58
  %v60 = vrot.slane %v55, %v59
  %vm62 = vcmask 195584
  %v64 = vsel %vm62, %v38, 0
  %v67 = vsel %vm62, %v39, 0
  %v70 = vsel %vm62, %v40, 0
  %v73 = vsel %vm62, %v41, 0
  %v76 = vsel %vm62, %v42, 0
  %v79 = vsel %vm62, %v43, 0
  %v82 = vsel %vm62, %v44, 0
  %v85 = vsel %vm62, %v45, 0
  %v88 = vsel %vm62, %v46, 0
  %v91 = vsel %vm62, %v47, 0
  %v94 = vsel %vm62, %v48, 0
  %v97 = vsel %vm62, %v49, 0
  %v100 = vsel %vm62, %v50, 0
  %v103 = vsel %vm62, %v51, 0
  %105 = vmatprep.subr.mxu0 0.0
  %106 = vmatpush1.msra.mxu0 %v52
  %107 = vmatprep.subr.mxu0 0.0
  %108 = vmatpush1.msra.mxu0 %v53
  %109 = vmatprep.subr.mxu0 0.0
  %110 = vmatpush1.msra.mxu0 %v54
  %111 = vmatprep.subr.mxu0 0.0
  %112 = vmatpush1.msra.mxu0 0.0
  %113 = vmatprep.subr.mxu0 0.0
  %114 = vmatpush1.msra.mxu0 0.0
  %115 = vmatprep.subr.mxu0 0.0
  %116 = vmatpush1.msra.mxu0 0.0
  %117 = vmatprep.subr.mxu0 0.0
  %118 = vmatpush1.msra.mxu0 0.0
  %119 = vmatprep.subr.mxu0 0.0
  %120 = vmatpush1.msra.mxu0 0.0
  %121 = vmatprep.subr.mxu0 0.0
  %122 = vmatpush1.msra.mxu0 0.0
  %123 = vmatprep.subr.mxu0 0.0
  %124 = vmatpush1.msra.mxu0 0.0
  %125 = vmatprep.subr.mxu0 0.0
  %126 = vmatpush1.msra.mxu0 0.0
  %127 = vmatprep.subr.mxu0 0.0
  %128 = vmatpush1.msra.mxu0 0.0
  %129 = vmatprep.subr.mxu0 0.0
  %130 = vmatpush1.msra.mxu0 0.0
  %131 = vmatprep.subr.mxu0 0.0
  %132 = vmatpush1.msra.mxu0 0.0
  %133 = vmatprep.subr.mxu0 0.0
  %134 = vmatpush1.msra.mxu0 0.0
  %135 = vmatprep.subr.mxu0 0.0
  %136 = vmatpush1.msra.mxu0 0.0
  %137 = vmatprep.subr.mxu0 0.0
  %138 = vmatpush1.msra.mxu0 0.0
  %139 = vmatprep.subr.mxu0 0.0
  %140 = vmatpush1.msra.mxu0 0.0
  %141 = vmatprep.subr.mxu0 0.0
  %142 = vmatpush1.msra.mxu0 0.0
  %143 = vmatprep.subr.mxu0 0.0
  %144 = vmatpush1.msra.mxu0 0.0
  %145 = vmatprep.subr.mxu0 0.0
  %146 = vmatpush1.msra.mxu0 0.0
  %147 = vmatprep.subr.mxu0 0.0
  %148 = vmatpush1.msra.mxu0 0.0
  %149 = vmatprep.subr.mxu0 0.0
  %150 = vmatpush1.msra.mxu0 0.0
  %151 = vmatprep.subr.mxu0 0.0
  %152 = vmatpush1.msra.mxu0 0.0
  %153 = vmatprep.subr.mxu0 0.0
  %154 = vmatpush1.msra.mxu0 0.0
  %155 = vmatprep.subr.mxu0 0.0
  %156 = vmatpush1.msra.mxu0 0.0
  %157 = vmatprep.subr.mxu0 0.0
  %158 = vmatpush1.msra.mxu0 0.0
  %159 = vmatprep.subr.mxu0 0.0
  %160 = vmatpush1.msra.mxu0 0.0
  %161 = vmatprep.subr.mxu0 0.0
  %162 = vmatpush1.msra.mxu0 0.0
  %163 = vmatprep.subr.mxu0 0.0
  %164 = vmatpush1.msra.mxu0 0.0
  %165 = vmatprep.subr.mxu0 0.0
  %166 = vmatpush1.msra.mxu0 0.0
  %167 = vmatprep.subr.mxu0 0.0
  %168 = vmatpush1.msra.mxu0 0.0
  %169 = vmatprep.mubr.f32.mxu0 0.0
  %170 = vmatmul.mubr.f32.gmra.mrb[0].mxu0 %v64
  %v171 = vpop.f32.mrb[0].mxu0
  %v172 = vadd.f32 %v60, %v171
  %v173 = vpop.f32.mrb[0].mxu0
  %174 = vmatprep.mubr.f32.mxu0 0.0
  %175 = vmatmul.mubr.f32.gmra.mrb[0].mxu0 %v67
  %v176 = vpop.f32.mrb[0].mxu0
  %v177 = vadd.f32 %v60, %v176
  %v178 = vpop.f32.mrb[0].mxu0
  %179 = vmatprep.mubr.f32.mxu0 0.0
  %180 = vmatmul.mubr.f32.gmra.mrb[0].mxu0 %v70
  %v181 = vpop.f32.mrb[0].mxu0
  %v182 = vadd.f32 %v60, %v181
  %v183 = vpop.f32.mrb[0].mxu0
  %184 = vmatprep.mubr.f32.mxu0 0.0
  %185 = vmatmul.mubr.f32.gmra.mrb[0].mxu0 %v73
  %v186 = vpop.f32.mrb[0].mxu0
  %v187 = vadd.f32 %v60, %v186
  %v188 = vpop.f32.mrb[0].mxu0
  %189 = vmatprep.mubr.f32.mxu0 0.0
  %190 = vmatmul.mubr.f32.gmra.mrb[0].mxu0 %v76
  %v191 = vpop.f32.mrb[0].mxu0
  %v192 = vadd.f32 %v60, %v191
  %v193 = vpop.f32.mrb[0].mxu0
  %194 = vmatprep.mubr.f32.mxu0 0.0
  %195 = vmatmul.mubr.f32.gmra.mrb[0].mxu0 %v79
  %v196 = vpop.f32.mrb[0].mxu0
  %v197 = vadd.f32 %v60, %v196
  %v198 = vpop.f32.mrb[0].mxu0
  %199 = vmatprep.mubr.f32.mxu0 0.0
  %200 = vmatmul.mubr.f32.gmra.mrb[0].mxu0 %v82
  %v201 = vpop.f32.mrb[0].mxu0
  %v202 = vadd.f32 %v60, %v201
  %v203 = vpop.f32.mrb[0].mxu0
  %204 = vmatprep.mubr.f32.mxu0 0.0
  %205 = vmatmul.mubr.f32.gmra.mrb[0].mxu0 %v85
  %v206 = vpop.f32.mrb[0].mxu0
  %v207 = vadd.f32 %v60, %v206
  %v208 = vpop.f32.mrb[0].mxu0
  %209 = vmatprep.mubr.f32.mxu0 0.0
  %210 = vmatmul.mubr.f32.gmra.mrb[0].mxu0 %v88
  %v211 = vpop.f32.mrb[0].mxu0
  %v212 = vadd.f32 %v60, %v211
  %v213 = vpop.f32.mrb[0].mxu0
  %214 = vmatprep.mubr.f32.mxu0 0.0
  %215 = vmatmul.mubr.f32.gmra.mrb[0].mxu0 %v91
  %v216 = vpop.f32.mrb[0].mxu0
  %v217 = vadd.f32 %v60, %v216
  %v218 = vpop.f32.mrb[0].mxu0
  %219 = vmatprep.mubr.f32.mxu0 0.0
  %220 = vmatmul.mubr.f32.gmra.mrb[0].mxu0 %v94
  %v221 = vpop.f32.mrb[0].mxu0
  %v222 = vadd.f32 %v60, %v221
  %v223 = vpop.f32.mrb[0].mxu0
  %224 = vmatprep.mubr.f32.mxu0 0.0
  %225 = vmatmul.mubr.f32.gmra.mrb[0].mxu0 %v97
  %v226 = vpop.f32.mrb[0].mxu0
  %v227 = vadd.f32 %v60, %v226
  %v228 = vpop.f32.mrb[0].mxu0
  %229 = vmatprep.mubr.f32.mxu0 0.0
  %230 = vmatmul.mubr.f32.gmra.mrb[0].mxu0 %v100
  %v231 = vpop.f32.mrb[0].mxu0
  %v232 = vadd.f32 %v60, %v231
  %v233 = vpop.f32.mrb[0].mxu0
  %234 = vmatprep.mubr.f32.mxu0 0.0
  %235 = vmatmul.mubr.f32.gmra.mrb[0].mxu0 %v103
  %v236 = vpop.f32.mrb[0].mxu0
  %v237 = vadd.f32 %v60, %v236
  %v238 = vpop.f32.mrb[0].mxu0
  %239 = vdwg.mxu0
  %v240 = vmax.f32 %v172, 0.0
  %v241 = vmax.f32 %v177, 0.0
  %v242 = vmax.f32 %v182, 0.0
  %v243 = vmax.f32 %v187, 0.0
  %v244 = vmax.f32 %v192, 0.0
  %v245 = vmax.f32 %v197, 0.0
  %v246 = vmax.f32 %v202, 0.0
  %v247 = vmax.f32 %v207, 0.0
  %v248 = vmax.f32 %v212, 0.0
  %v249 = vmax.f32 %v217, 0.0
  %v250 = vmax.f32 %v222, 0.0
  %v251 = vmax.f32 %v227, 0.0
  %v252 = vmax.f32 %v232, 0.0
  %v253 = vmax.f32 %v237, 0.0
  %v254 = vmax.f32 %v240, %v242
  %v255 = vmax.f32 %v241, %v243
  %v256 = vmax.f32 %v254, %v244
  %v257 = vmax.f32 %v255, %v245
  %v258 = vmax.f32 %v256, %v246
  %v259 = vmax.f32 %v257, %v247
  %v260 = vmax.f32 %v258, %v248
  %v261 = vmax.f32 %v259, %v249
  %v262 = vmax.f32 %v260, %v250
  %v263 = vmax.f32 %v261, %v251
  %v264 = vld [vmem:[%s6 + $0x6] sm:$0x1]
  %v265 = vlaneseq
  %v266 = vshrl.u32 %v265, 7
  %v267 = vsub.s32 0, %v266
  %v268 = vrot.slane %v264, %v267
  %v269 = vmul.f32 %v252, %v268
  %v270 = vmul.f32 %v253, %v268
  %v271 = vmax.f32 %v262, %v269
  %v272 = vmax.f32 %v263, %v270
  %v273 = vld [vmem:[%s1] sm:$0xff]
  %v274 = vld [vmem:[%s1 + $0x8] sm:$0xff]
  %v275 = vadd.f32 %v273, %v271
  %v276 = vadd.f32 %v274, %v272
  %v277 = vld [vmem:[%s7] sm:$0xff]
  %v278 = vld [vmem:[%s7 + $0x8] sm:$0xff]
  %v279 = vld [vmem:[%s7 + $0x10] sm:$0xff]
  %v280 = vld [vmem:[%s7 + $0x18] sm:$0xff]
  %v281 = vld [vmem:[%s7 + $0x20] sm:$0xff]
  %v282 = vld [vmem:[%s7 + $0x28] sm:$0xff]
  %v283 = vld [vmem:[%s7 + $0x30] sm:$0xff]
  %v284 = vld [vmem:[%s7 + $0x38] sm:$0xff]
  %v285 = vld [vmem:[%s7 + $0x40] sm:$0xff]
  %v286 = vld [vmem:[%s7 + $0x48] sm:$0xff]
  %v287 = vld [vmem:[%s7 + $0x50] sm:$0xff]
  %v288 = vld [vmem:[%s7 + $0x58] sm:$0xff]
  %v289 = vld [vmem:[%s7 + $0x60] sm:$0xff]
  %v290 = vld [vmem:[%s7 + $0x68] sm:$0xff]
  %v291 = vld [vmem:[%s7 + $0x70] sm:$0xff]
  %v292 = vld [vmem:[%s7 + $0x78] sm:$0xff]
  %v293 = vld [vmem:[%s7 + $0x80] sm:$0xff]
  %v294 = vld [vmem:[%s7 + $0x88] sm:$0xff]
  %v295 = vld [vmem:[%s7 + $0x90] sm:$0xff]
  %v296 = vld [vmem:[%s7 + $0x98] sm:$0xff]
  %v297 = vld [vmem:[%s7 + $0xa0] sm:$0xff]
  %v298 = vld [vmem:[%s7 + $0xa8] sm:$0xff]
  %v299 = vld [vmem:[%s7 + $0xb0] sm:$0xff]
  %v300 = vld [vmem:[%s7 + $0xb8] sm:$0xff]
  %v301 = vld [vmem:[%s7 + $0xc0] sm:$0xff]
  %v302 = vld [vmem:[%s7 + $0xc8] sm:$0xff]
  %v303 = vld [vmem:[%s7 + $0xd0] sm:$0xff]
  %v304 = vld [vmem:[%s7 + $0xd8] sm:$0xff]
  %v305 = vld [vmem:[%s7 + $0xe0] sm:$0xff]
  %v306 = vld [vmem:[%s7 + $0xe8] sm:$0xff]
  %v307 = vld [vmem:[%s7 + $0xf0] sm:$0xff]
  %v308 = vld [vmem:[%s7 + $0xf8] sm:$0xff]
  %309 = vmatprep.subr.mxu0 %v278
  %310 = vmatpush1.msra.mxu0 %v277
  %311 = vmatprep.subr.mxu0 %v280
  %312 = vmatpush1.msra.mxu0 %v279
  %313 = vmatprep.subr.mxu0 %v282
  %314 = vmatpush1.msra.mxu0 %v281
  %315 = vmatprep.subr.mxu0 %v284
  %316 = vmatpush1.msra.mxu0 %v283
  %317 = vmatprep.subr.mxu0 %v286
  %318 = vmatpush1.msra.mxu0 %v285
  %319 = vmatprep.subr.mxu0 %v288
  %320 = vmatpush1.msra.mxu0 %v287
  %321 = vmatprep.subr.mxu0 %v290
  %322 = vmatpush1.msra.mxu0 %v289
  %323 = vmatprep.subr.mxu0 %v292
  %324 = vmatpush1.msra.mxu0 %v291
  %325 = vmatprep.subr.mxu0 %v294
  %326 = vmatpush1.msra.mxu0 %v293
  %327 = vmatprep.subr.mxu0 %v296
  %328 = vmatpush1.msra.mxu0 %v295
  %329 = vmatprep.subr.mxu0 %v298
  %330 = vmatpush1.msra.mxu0 %v297
  %331 = vmatprep.subr.mxu0 %v300
  %332 = vmatpush1.msra.mxu0 %v299
  %333 = vmatprep.subr.mxu0 %v302
  %334 = vmatpush1.msra.mxu0 %v301
  %335 = vmatprep.subr.mxu0 %v304
  %336 = vmatpush1.msra.mxu0 %v303
  %337 = vmatprep.subr.mxu0 %v306
  %338 = vmatpush1.msra.mxu0 %v305
  %339 = vmatprep.subr.mxu0 %v308
  %340 = vmatpush1.msra.mxu0 %v307
  %341 = vmatprep.subr.mxu0 0.0
  %342 = vmatpush1.msra.mxu0 0.0
  %343 = vmatprep.subr.mxu0 0.0
  %344 = vmatpush1.msra.mxu0 0.0
  %345 = vmatprep.subr.mxu0 0.0
  %346 = vmatpush1.msra.mxu0 0.0
  %347 = vmatprep.subr.mxu0 0.0
  %348 = vmatpush1.msra.mxu0 0.0
  %349 = vmatprep.subr.mxu0 0.0
  %350 = vmatpush1.msra.mxu0 0.0
  %351 = vmatprep.subr.mxu0 0.0
  %352 = vmatpush1.msra.mxu0 0.0
  %353 = vmatprep.subr.mxu0 0.0
  %354 = vmatpush1.msra.mxu0 0.0
  %355 = vmatprep.subr.mxu0 0.0
  %356 = vmatpush1.msra.mxu0 0.0
  %357 = vmatprep.subr.mxu0 0.0
  %358 = vmatpush1.msra.mxu0 0.0
  %359 = vmatprep.subr.mxu0 0.0
  %360 = vmatpush1.msra.mxu0 0.0
  %361 = vmatprep.subr.mxu0 0.0
  %362 = vmatpush1.msra.mxu0 0.0
  %363 = vmatprep.subr.mxu0 0.0
  %364 = vmatpush1.msra.mxu0 0.0
  %365 = vmatprep.subr.mxu0 0.0
  %366 = vmatpush1.msra.mxu0 0.0
  %367 = vmatprep.subr.mxu0 0.0
  %368 = vmatpush1.msra.mxu0 0.0
  %369 = vmatprep.subr.mxu0 0.0
  %370 = vmatpush1.msra.mxu0 0.0
  %371 = vmatprep.subr.mxu0 0.0
  %372 = vmatpush1.msra.mxu0 0.0
  %373 = vmatprep.mubr.f32.mxu0 0.0
  %374 = vmatmul.mubr.f32.gmra.mrb[0].mxu0 %v275
  %v375 = vpop.f32.mrb[0].mxu0
  %v376 = vadd.f32 0.0, %v375
  %v377 = vpop.f32.mrb[0].mxu0
  %v378 = vadd.f32 0.0, %v377
  %379 = vmatprep.mubr.f32.mxu0 0.0
  %380 = vmatmul.mubr.f32.gmra.mrb[0].mxu0 %v276
  %v381 = vpop.f32.mrb[0].mxu0
  %v382 = vadd.f32 0.0, %v381
  %v383 = vpop.f32.mrb[0].mxu0
  %v384 = vadd.f32 0.0, %v383
  %385 = vdwg.mxu0
  %386 = vst [vmem:[#allocation2] sm:$0xff] %v376
  %387 = vst [vmem:[#allocation2 + $0x8] sm:$0xff] %v378
  %388 = vst [vmem:[#allocation2 + $0x10] sm:$0xff] %v382
  %389 = vst [vmem:[#allocation2 + $0x18] sm:$0xff] %v384
  %s390 = scalar_lea.vmem %s7, 256
  %v391 = vld [vmem:[%s390] sm:$0xff]
  %v392 = vld [vmem:[%s390 + $0x8] sm:$0xff]
  %v393 = vld [vmem:[%s390 + $0x10] sm:$0xff]
  %v394 = vld [vmem:[%s390 + $0x18] sm:$0xff]
  %v395 = vld [vmem:[%s390 + $0x20] sm:$0xff]
  %v396 = vld [vmem:[%s390 + $0x28] sm:$0xff]
  %v397 = vld [vmem:[%s390 + $0x30] sm:$0xff]
  %v398 = vld [vmem:[%s390 + $0x38] sm:$0xff]
  %v399 = vld [vmem:[%s390 + $0x40] sm:$0xff]
  %v400 = vld [vmem:[%s390 + $0x48] sm:$0xff]
  %v401 = vld [vmem:[%s390 + $0x50] sm:$0xff]
  %v402 = vld [vmem:[%s390 + $0x58] sm:$0xff]
  %v403 = vld [vmem:[%s390 + $0x60] sm:$0xff]
  %v404 = vld [vmem:[%s390 + $0x68] sm:$0xff]
  %v405 = vld [vmem:[%s390 + $0x70] sm:$0xff]
  %v406 = vld [vmem:[%s390 + $0x78] sm:$0xff]
  %v407 = vld [vmem:[%s390 + $0x80] sm:$0xff]
  %v408 = vld [vmem:[%s390 + $0x88] sm:$0xff]
  %v409 = vld [vmem:[%s390 + $0x90] sm:$0xff]
  %v410 = vld [vmem:[%s390 + $0x98] sm:$0xff]
  %v411 = vld [vmem:[%s390 + $0xa0] sm:$0xff]
  %v412 = vld [vmem:[%s390 + $0xa8] sm:$0xff]
  %v413 = vld [vmem:[%s390 + $0xb0] sm:$0xff]
  %v414 = vld [vmem:[%s390 + $0xb8] sm:$0xff]
  %v415 = vld [vmem:[%s390 + $0xc0] sm:$0xff]
  %v416 = vld [vmem:[%s390 + $0xc8] sm:$0xff]
  %v417 = vld [vmem:[%s390 + $0xd0] sm:$0xff]
  %v418 = vld [vmem:[%s390 + $0xd8] sm:$0xff]
  %v419 = vld [vmem:[%s390 + $0xe0] sm:$0xff]
  %v420 = vld [vmem:[%s390 + $0xe8] sm:$0xff]
  %v421 = vld [vmem:[%s390 + $0xf0] sm:$0xff]
  %v422 = vld [vmem:[%s390 + $0xf8] sm:$0xff]
  %423 = vmatprep.subr.mxu0 %v392
  %424 = vmatpush1.msra.mxu0 %v391
  %425 = vmatprep.subr.mxu0 %v394
  %426 = vmatpush1.msra.mxu0 %v393
  %427 = vmatprep.subr.mxu0 %v396
  %428 = vmatpush1.msra.mxu0 %v395
  %429 = vmatprep.subr.mxu0 %v398
  %430 = vmatpush1.msra.mxu0 %v397
  %431 = vmatprep.subr.mxu0 %v400
  %432 = vmatpush1.msra.mxu0 %v399
  %433 = vmatprep.subr.mxu0 %v402
  %434 = vmatpush1.msra.mxu0 %v401
  %435 = vmatprep.subr.mxu0 %v404
  %436 = vmatpush1.msra.mxu0 %v403
  %437 = vmatprep.subr.mxu0 %v406
  %438 = vmatpush1.msra.mxu0 %v405
  %439 = vmatprep.subr.mxu0 %v408
  %440 = vmatpush1.msra.mxu0 %v407
  %441 = vmatprep.subr.mxu0 %v410
  %442 = vmatpush1.msra.mxu0 %v409
  %443 = vmatprep.subr.mxu0 %v412
  %444 = vmatpush1.msra.mxu0 %v411
  %445 = vmatprep.subr.mxu0 %v414
  %446 = vmatpush1.msra.mxu0 %v413
  %447 = vmatprep.subr.mxu0 %v416
  %448 = vmatpush1.msra.mxu0 %v415
  %449 = vmatprep.subr.mxu0 %v418
  %450 = vmatpush1.msra.mxu0 %v417
  %451 = vmatprep.subr.mxu0 %v420
  %452 = vmatpush1.msra.mxu0 %v419
  %453 = vmatprep.subr.mxu0 %v422
  %454 = vmatpush1.msra.mxu0 %v421
  %455 = vmatprep.subr.mxu0 0.0
  %456 = vmatpush1.msra.mxu0 0.0
  %457 = vmatprep.subr.mxu0 0.0
  %458 = vmatpush1.msra.mxu0 0.0
  %459 = vmatprep.subr.mxu0 0.0
  %460 = vmatpush1.msra.mxu0 0.0
  %461 = vmatprep.subr.mxu0 0.0
  %462 = vmatpush1.msra.mxu0 0.0
  %463 = vmatprep.subr.mxu0 0.0
  %464 = vmatpush1.msra.mxu0 0.0
  %465 = vmatprep.subr.mxu0 0.0
  %466 = vmatpush1.msra.mxu0 0.0
  %467 = vmatprep.subr.mxu0 0.0
  %468 = vmatpush1.msra.mxu0 0.0
  %469 = vmatprep.subr.mxu0 0.0
  %470 = vmatpush1.msra.mxu0 0.0
  %471 = vmatprep.subr.mxu0 0.0
  %472 = vmatpush1.msra.mxu0 0.0
  %473 = vmatprep.subr.mxu0 0.0
  %474 = vmatpush1.msra.mxu0 0.0
  %475 = vmatprep.subr.mxu0 0.0
  %476 = vmatpush1.msra.mxu0 0.0
  %477 = vmatprep.subr.mxu0 0.0
  %478 = vmatpush1.msra.mxu0 0.0
  %479 = vmatprep.subr.mxu0 0.0
  %480 = vmatpush1.msra.mxu0 0.0
  %481 = vmatprep.subr.mxu0 0.0
  %482 = vmatpush1.msra.mxu0 0.0
  %483 = vmatprep.subr.mxu0 0.0
  %484 = vmatpush1.msra.mxu0 0.0
  %485 = vmatprep.subr.mxu0 0.0
  %486 = vmatpush1.msra.mxu0 0.0
  %487 = vmatprep.mubr.f32.mxu0 0.0
  %488 = vmatmul.mubr.f32.gmra.mrb[0].mxu0 %v275
  %v489 = vpop.f32.mrb[0].mxu0
  %v490 = vadd.f32 0.0, %v489
  %v491 = vpop.f32.mrb[0].mxu0
  %v492 = vadd.f32 0.0, %v491
  %493 = vmatprep.mubr.f32.mxu0 0.0
  %494 = vmatmul.mubr.f32.gmra.mrb[0].mxu0 %v276
  %v495 = vpop.f32.mrb[0].mxu0
  %v496 = vadd.f32 0.0, %v495
  %v497 = vpop.f32.mrb[0].mxu0
  %v498 = vadd.f32 0.0, %v497
  %499 = vdwg.mxu0
  %500 = vst [vmem:[#allocation2 + $0x20] sm:$0xff] %v490
  %501 = vst [vmem:[#allocation2 + $0x28] sm:$0xff] %v492
  %502 = vst [vmem:[#allocation2 + $0x30] sm:$0xff] %v496
  %503 = vst [vmem:[#allocation2 + $0x38] sm:$0xff] %v498
  %s504 = scalar_lea.vmem %s7, 512
  %v505 = vld [vmem:[%s504] sm:$0xff]
  %v506 = vld [vmem:[%s504 + $0x8] sm:$0xff]
  %v507 = vld [vmem:[%s504 + $0x10] sm:$0xff]
  %v508 = vld [vmem:[%s504 + $0x18] sm:$0xff]
  %v509 = vld [vmem:[%s504 + $0x20] sm:$0xff]
  %v510 = vld [vmem:[%s504 + $0x28] sm:$0xff]
  %v511 = vld [vmem:[%s504 + $0x30] sm:$0xff]
  %v512 = vld [vmem:[%s504 + $0x38] sm:$0xff]
  %v513 = vld [vmem:[%s504 + $0x40] sm:$0xff]
  %v514 = vld [vmem:[%s504 + $0x48] sm:$0xff]
  %v515 = vld [vmem:[%s504 + $0x50] sm:$0xff]
  %v516 = vld [vmem:[%s504 + $0x58] sm:$0xff]
  %v517 = vld [vmem:[%s504 + $0x60] sm:$0xff]
  %v518 = vld [vmem:[%s504 + $0x68] sm:$0xff]
  %v519 = vld [vmem:[%s504 + $0x70] sm:$0xff]
  %v520 = vld [vmem:[%s504 + $0x78] sm:$0xff]
  %v521 = vld [vmem:[%s504 + $0x80] sm:$0xff]
  %v522 = vld [vmem:[%s504 + $0x88] sm:$0xff]
  %v523 = vld [vmem:[%s504 + $0x90] sm:$0xff]
  %v524 = vld [vmem:[%s504 + $0x98] sm:$0xff]
  %v525 = vld [vmem:[%s504 + $0xa0] sm:$0xff]
  %v526 = vld [vmem:[%s504 + $0xa8] sm:$0xff]
  %v527 = vld [vmem:[%s504 + $0xb0] sm:$0xff]
  %v528 = vld [vmem:[%s504 + $0xb8] sm:$0xff]
  %v529 = vld [vmem:[%s504 + $0xc0] sm:$0xff]
  %v530 = vld [vmem:[%s504 + $0xc8] sm:$0xff]
  %v531 = vld [vmem:[%s504 + $0xd0] sm:$0xff]
  %v532 = vld [vmem:[%s504 + $0xd8] sm:$0xff]
  %v533 = vld [vmem:[%s504 + $0xe0] sm:$0xff]
  %v534 = vld [vmem:[%s504 + $0xe8] sm:$0xff]
  %v535 = vld [vmem:[%s504 + $0xf0] sm:$0xff]
  %v536 = vld [vmem:[%s504 + $0xf8] sm:$0xff]
  %537 = vmatprep.subr.mxu0 %v506
  %538 = vmatpush1.msra.mxu0 %v505
  %539 = vmatprep.subr.mxu0 %v508
  %540 = vmatpush1.msra.mxu0 %v507
  %541 = vmatprep.subr.mxu0 %v510
  %542 = vmatpush1.msra.mxu0 %v509
  %543 = vmatprep.subr.mxu0 %v512
  %544 = vmatpush1.msra.mxu0 %v511
  %545 = vmatprep.subr.mxu0 %v514
  %546 = vmatpush1.msra.mxu0 %v513
  %547 = vmatprep.subr.mxu0 %v516
  %548 = vmatpush1.msra.mxu0 %v515
  %549 = vmatprep.subr.mxu0 %v518
  %550 = vmatpush1.msra.mxu0 %v517
  %551 = vmatprep.subr.mxu0 %v520
  %552 = vmatpush1.msra.mxu0 %v519
  %553 = vmatprep.subr.mxu0 %v522
  %554 = vmatpush1.msra.mxu0 %v521
  %555 = vmatprep.subr.mxu0 %v524
  %556 = vmatpush1.msra.mxu0 %v523
  %557 = vmatprep.subr.mxu0 %v526
  %558 = vmatpush1.msra.mxu0 %v525
  %559 = vmatprep.subr.mxu0 %v528
  %560 = vmatpush1.msra.mxu0 %v527
  %561 = vmatprep.subr.mxu0 %v530
  %562 = vmatpush1.msra.mxu0 %v529
  %563 = vmatprep.subr.mxu0 %v532
  %564 = vmatpush1.msra.mxu0 %v531
  %565 = vmatprep.subr.mxu0 %v534
  %566 = vmatpush1.msra.mxu0 %v533
  %567 = vmatprep.subr.mxu0 %v536
  %568 = vmatpush1.msra.mxu0 %v535
  %569 = vmatprep.subr.mxu0 0.0
  %570 = vmatpush1.msra.mxu0 0.0
  %571 = vmatprep.subr.mxu0 0.0
  %572 = vmatpush1.msra.mxu0 0.0
  %573 = vmatprep.subr.mxu0 0.0
  %574 = vmatpush1.msra.mxu0 0.0
  %575 = vmatprep.subr.mxu0 0.0
  %576 = vmatpush1.msra.mxu0 0.0
  %577 = vmatprep.subr.mxu0 0.0
  %578 = vmatpush1.msra.mxu0 0.0
  %579 = vmatprep.subr.mxu0 0.0
  %580 = vmatpush1.msra.mxu0 0.0
  %581 = vmatprep.subr.mxu0 0.0
  %582 = vmatpush1.msra.mxu0 0.0
  %583 = vmatprep.subr.mxu0 0.0
  %584 = vmatpush1.msra.mxu0 0.0
  %585 = vmatprep.subr.mxu0 0.0
  %586 = vmatpush1.msra.mxu0 0.0
  %587 = vmatprep.subr.mxu0 0.0
  %588 = vmatpush1.msra.mxu0 0.0
  %589 = vmatprep.subr.mxu0 0.0
  %590 = vmatpush1.msra.mxu0 0.0
  %591 = vmatprep.subr.mxu0 0.0
  %592 = vmatpush1.msra.mxu0 0.0
  %593 = vmatprep.subr.mxu0 0.0
  %594 = vmatpush1.msra.mxu0 0.0
  %595 = vmatprep.subr.mxu0 0.0
  %596 = vmatpush1.msra.mxu0 0.0
  %597 = vmatprep.subr.mxu0 0.0
  %598 = vmatpush1.msra.mxu0 0.0
  %599 = vmatprep.subr.mxu0 0.0
  %600 = vmatpush1.msra.mxu0 0.0
  %601 = vmatprep.mubr.f32.mxu0 0.0
  %602 = vmatmul.mubr.f32.gmra.mrb[0].mxu0 %v275
  %v603 = vpop.f32.mrb[0].mxu0
  %v604 = vadd.f32 0.0, %v603
  %v605 = vpop.f32.mrb[0].mxu0
  %v606 = vadd.f32 0.0, %v605
  %607 = vmatprep.mubr.f32.mxu0 0.0
  %608 = vmatmul.mubr.f32.gmra.mrb[0].mxu0 %v276
  %v609 = vpop.f32.mrb[0].mxu0
  %v610 = vadd.f32 0.0, %v609
  %v611 = vpop.f32.mrb[0].mxu0
  %v612 = vadd.f32 0.0, %v611
  %613 = vdwg.mxu0
  %614 = vst [vmem:[#allocation2 + $0x40] sm:$0xff] %v604
  %615 = vst [vmem:[#allocation2 + $0x48] sm:$0xff] %v606
  %616 = vst [vmem:[#allocation2 + $0x50] sm:$0xff] %v610
  %617 = vst [vmem:[#allocation2 + $0x58] sm:$0xff] %v612
  %v618 = vld [vmem:[%s2] sm:$0xff]
  %v619 = vld [vmem:[%s2 + $0x8] sm:$0xff]
  %v620 = vld [vmem:[#allocation2] sm:$0xff]
  %v621 = vld [vmem:[#allocation2 + $0x8] sm:$0xff]
  %v622 = vld [vmem:[#allocation2 + $0x10] sm:$0xff]
  %v623 = vld [vmem:[#allocation2 + $0x18] sm:$0xff]
  %v624 = vld [vmem:[#allocation2 + $0x20] sm:$0xff]
  %v625 = vld [vmem:[#allocation2 + $0x28] sm:$0xff]
  %v626 = vld [vmem:[#allocation2 + $0x30] sm:$0xff]
  %v627 = vld [vmem:[#allocation2 + $0x38] sm:$0xff]
  %v628 = vld [vmem:[#allocation2 + $0x40] sm:$0xff]
  %v629 = vld [vmem:[#allocation2 + $0x48] sm:$0xff]
  %v630 = vld [vmem:[#allocation2 + $0x50] sm:$0xff]
  %v631 = vld [vmem:[#allocation2 + $0x58] sm:$0xff]
  %v632 = vld [vmem:[%s8] sm:$0x3]
  %v634 = vlaneseq
  %v635 = vshrl.u32 %v634, 7
  %v636 = vsub.s32 0, %v635
  %v637 = vrot.slane %v632, %v636
  %v638 = vlaneseq
  %v639 = vshrl.u32 %v638, 7
  %v640 = vsub.s32 1, %v639
  %v641 = vrot.slane %v632, %v640
  %vm644 = vcmask 392192
  %v646 = vsel %vm644, %v618, 0
  %v649 = vsel %vm644, %v619, 0
  %651 = vmatprep.subr.mxu0 %v621
  %652 = vmatpush1.msra.mxu0 %v620
  %653 = vmatprep.subr.mxu0 %v623
  %654 = vmatpush1.msra.mxu0 %v622
  %655 = vmatprep.subr.mxu0 %v625
  %656 = vmatpush1.msra.mxu0 %v624
  %657 = vmatprep.subr.mxu0 %v627
  %658 = vmatpush1.msra.mxu0 %v626
  %659 = vmatprep.subr.mxu0 %v629
  %660 = vmatpush1.msra.mxu0 %v628
  %661 = vmatprep.subr.mxu0 %v631
  %662 = vmatpush1.msra.mxu0 %v630
  %663 = vmatprep.subr.mxu0 0.0
  %664 = vmatpush1.msra.mxu0 0.0
  %665 = vmatprep.subr.mxu0 0.0
  %666 = vmatpush1.msra.mxu0 0.0
  %667 = vmatprep.subr.mxu0 0.0
  %668 = vmatpush1.msra.mxu0 0.0
  %669 = vmatprep.subr.mxu0 0.0
  %670 = vmatpush1.msra.mxu0 0.0
  %671 = vmatprep.subr.mxu0 0.0
  %672 = vmatpush1.msra.mxu0 0.0
  %673 = vmatprep.subr.mxu0 0.0
  %674 = vmatpush1.msra.mxu0 0.0
  %675 = vmatprep.subr.mxu0 0.0
  %676 = vmatpush1.msra.mxu0 0.0
  %677 = vmatprep.subr.mxu0 0.0
  %678 = vmatpush1.msra.mxu0 0.0
  %679 = vmatprep.subr.mxu0 0.0
  %680 = vmatpush1.msra.mxu0 0.0
  %681 = vmatprep.subr.mxu0 0.0
  %682 = vmatpush1.msra.mxu0 0.0
  %683 = vmatprep.subr.mxu0 0.0
  %684 = vmatpush1.msra.mxu0 0.0
  %685 = vmatprep.subr.mxu0 0.0
  %686 = vmatpush1.msra.mxu0 0.0
  %687 = vmatprep.subr.mxu0 0.0
  %688 = vmatpush1.msra.mxu0 0.0
  %689 = vmatprep.subr.mxu0 0.0
  %690 = vmatpush1.msra.mxu0 0.0
  %691 = vmatprep.subr.mxu0 0.0
  %692 = vmatpush1.msra.mxu0 0.0
  %693 = vmatprep.subr.mxu0 0.0
  %694 = vmatpush1.msra.mxu0 0.0
  %695 = vmatprep.subr.mxu0 0.0
  %696 = vmatpush1.msra.mxu0 0.0
  %697 = vmatprep.subr.mxu0 0.0
  %698 = vmatpush1.msra.mxu0 0.0
  %699 = vmatprep.subr.mxu0 0.0
  %700 = vmatpush1.msra.mxu0 0.0
  %701 = vmatprep.subr.mxu0 0.0
  %702 = vmatpush1.msra.mxu0 0.0
  %703 = vmatprep.subr.mxu0 0.0
  %704 = vmatpush1.msra.mxu0 0.0
  %705 = vmatprep.subr.mxu0 0.0
  %706 = vmatpush1.msra.mxu0 0.0
  %707 = vmatprep.subr.mxu0 0.0
  %708 = vmatpush1.msra.mxu0 0.0
  %709 = vmatprep.subr.mxu0 0.0
  %710 = vmatpush1.msra.mxu0 0.0
  %711 = vmatprep.subr.mxu0 0.0
  %712 = vmatpush1.msra.mxu0 0.0
  %713 = vmatprep.subr.mxu0 0.0
  %714 = vmatpush1.msra.mxu0 0.0
  %715 = vmatprep.mubr.f32.mxu0 0.0
  %716 = vmatmul.mubr.f32.gmra.mrb[0].mxu0 %v646
  %v717 = vpop.f32.mrb[0].mxu0
  %v718 = vadd.f32 %v637, %v717
  %v719 = vpop.f32.mrb[0].mxu0
  %v720 = vadd.f32 %v641, %v719
  %721 = vmatprep.mubr.f32.mxu0 0.0
  %722 = vmatmul.mubr.f32.gmra.mrb[0].mxu0 %v649
  %v723 = vpop.f32.mrb[0].mxu0
  %v724 = vadd.f32 %v637, %v723
  %v725 = vpop.f32.mrb[0].mxu0
  %v726 = vadd.f32 %v641, %v725
  %727 = vdwg.mxu0
  %v728 = vmax.f32 %v718, 0.0
  %v729 = vmax.f32 %v724, 0.0
  %v730 = vxor.u32 %v720, 2147483648
  %v731 = vxor.u32 %v726, 2147483648
  %v732 = vmul.f32 %v730, 1.442695
  %v733 = vpow.pop %v732
  %v734 = vmul.f32 %v731, 1.442695
  %v735 = vpow.pop %v734
  %v736 = vadd.f32 %v733, 1.0
  %v737 = vadd.f32 %v735, 1.0
  %v738 = vrcp.pop %v736
  %v739 = vmul.f32 1.0, %v738
  %v740 = vrcp.pop %v737
  %v741 = vmul.f32 1.0, %v740
  %v742 = vmul.f32 %v728, %v739
  %v743 = vmul.f32 %v729, %v741
  %v744 = vadd.f32 %v742, %v275
  %v745 = vadd.f32 %v743, %v276
  %s746 = scalar_lea.vmem %s7, 768
  %v747 = vld [vmem:[%s746] sm:$0xff]
  %v748 = vld [vmem:[%s746 + $0x8] sm:$0xff]
  %v749 = vld [vmem:[%s746 + $0x10] sm:$0xff]
  %v750 = vld [vmem:[%s746 + $0x18] sm:$0xff]
  %v751 = vld [vmem:[%s746 + $0x20] sm:$0xff]
  %v752 = vld [vmem:[%s746 + $0x28] sm:$0xff]
  %v753 = vld [vmem:[%s746 + $0x30] sm:$0xff]
  %v754 = vld [vmem:[%s746 + $0x38] sm:$0xff]
  %v755 = vld [vmem:[%s746 + $0x40] sm:$0xff]
  %v756 = vld [vmem:[%s746 + $0x48] sm:$0xff]
  %v757 = vld [vmem:[%s746 + $0x50] sm:$0xff]
  %v758 = vld [vmem:[%s746 + $0x58] sm:$0xff]
  %v759 = vld [vmem:[%s746 + $0x60] sm:$0xff]
  %v760 = vld [vmem:[%s746 + $0x68] sm:$0xff]
  %v761 = vld [vmem:[%s746 + $0x70] sm:$0xff]
  %v762 = vld [vmem:[%s746 + $0x78] sm:$0xff]
  %v763 = vld [vmem:[%s746 + $0x80] sm:$0xff]
  %v764 = vld [vmem:[%s746 + $0x88] sm:$0xff]
  %v765 = vld [vmem:[%s746 + $0x90] sm:$0xff]
  %v766 = vld [vmem:[%s746 + $0x98] sm:$0xff]
  %v767 = vld [vmem:[%s746 + $0xa0] sm:$0xff]
  %v768 = vld [vmem:[%s746 + $0xa8] sm:$0xff]
  %v769 = vld [vmem:[%s746 + $0xb0] sm:$0xff]
  %v770 = vld [vmem:[%s746 + $0xb8] sm:$0xff]
  %v771 = vld [vmem:[%s746 + $0xc0] sm:$0xff]
  %v772 = vld [vmem:[%s746 + $0xc8] sm:$0xff]
  %v773 = vld [vmem:[%s746 + $0xd0] sm:$0xff]
  %v774 = vld [vmem:[%s746 + $0xd8] sm:$0xff]
  %v775 = vld [vmem:[%s746 + $0xe0] sm:$0xff]
  %v776 = vld [vmem:[%s746 + $0xe8] sm:$0xff]
  %v777 = vld [vmem:[%s746 + $0xf0] sm:$0xff]
  %v778 = vld [vmem:[%s746 + $0xf8] sm:$0xff]
  %779 = vmatprep.subr.mxu0 %v748
  %780 = vmatpush1.msra.mxu0 %v747
  %781 = vmatprep.subr.mxu0 %v750
  %782 = vmatpush1.msra.mxu0 %v749
  %783 = vmatprep.subr.mxu0 %v752
  %784 = vmatpush1.msra.mxu0 %v751
  %785 = vmatprep.subr.mxu0 %v754
  %786 = vmatpush1.msra.mxu0 %v753
  %787 = vmatprep.subr.mxu0 %v756
  %788 = vmatpush1.msra.mxu0 %v755
  %789 = vmatprep.subr.mxu0 %v758
  %790 = vmatpush1.msra.mxu0 %v757
  %791 = vmatprep.subr.mxu0 %v760
  %792 = vmatpush1.msra.mxu0 %v759
  %793 = vmatprep.subr.mxu0 %v762
  %794 = vmatpush1.msra.mxu0 %v761
  %795 = vmatprep.subr.mxu0 %v764
  %796 = vmatpush1.msra.mxu0 %v763
  %797 = vmatprep.subr.mxu0 %v766
  %798 = vmatpush1.msra.mxu0 %v765
  %799 = vmatprep.subr.mxu0 %v768
  %800 = vmatpush1.msra.mxu0 %v767
  %801 = vmatprep.subr.mxu0 %v770
  %802 = vmatpush1.msra.mxu0 %v769
  %803 = vmatprep.subr.mxu0 %v772
  %804 = vmatpush1.msra.mxu0 %v771
  %805 = vmatprep.subr.mxu0 %v774
  %806 = vmatpush1.msra.mxu0 %v773
  %807 = vmatprep.subr.mxu0 %v776
  %808 = vmatpush1.msra.mxu0 %v775
  %809 = vmatprep.subr.mxu0 %v778
  %810 = vmatpush1.msra.mxu0 %v777
  %811 = vmatprep.subr.mxu0 0.0
  %812 = vmatpush1.msra.mxu0 0.0
  %813 = vmatprep.subr.mxu0 0.0
  %814 = vmatpush1.msra.mxu0 0.0
  %815 = vmatprep.subr.mxu0 0.0
  %816 = vmatpush1.msra.mxu0 0.0
  %817 = vmatprep.subr.mxu0 0.0
  %818 = vmatpush1.msra.mxu0 0.0
  %819 = vmatprep.subr.mxu0 0.0
  %820 = vmatpush1.msra.mxu0 0.0
  %821 = vmatprep.subr.mxu0 0.0
  %822 = vmatpush1.msra.mxu0 0.0
  %823 = vmatprep.subr.mxu0 0.0
  %824 = vmatpush1.msra.mxu0 0.0
  %825 = vmatprep.subr.mxu0 0.0
  %826 = vmatpush1.msra.mxu0 0.0
  %827 = vmatprep.subr.mxu0 0.0
  %828 = vmatpush1.msra.mxu0 0.0
  %829 = vmatprep.subr.mxu0 0.0
  %830 = vmatpush1.msra.mxu0 0.0
  %831 = vmatprep.subr.mxu0 0.0
  %832 = vmatpush1.msra.mxu0 0.0
  %833 = vmatprep.subr.mxu0 0.0
  %834 = vmatpush1.msra.mxu0 0.0
  %835 = vmatprep.subr.mxu0 0.0
  %836 = vmatpush1.msra.mxu0 0.0
  %837 = vmatprep.subr.mxu0 0.0
  %838 = vmatpush1.msra.mxu0 0.0
  %839 = vmatprep.subr.mxu0 0.0
  %840 = vmatpush1.msra.mxu0 0.0
  %841 = vmatprep.subr.mxu0 0.0
  %842 = vmatpush1.msra.mxu0 0.0
  %843 = vmatprep.mubr.f32.mxu0 0.0
  %844 = vmatmul.mubr.f32.gmra.mrb[0].mxu0 %v744
  %v845 = vpop.f32.mrb[0].mxu0
  %v846 = vadd.f32 0.0, %v845
  %v847 = vpop.f32.mrb[0].mxu0
  %v848 = vadd.f32 0.0, %v847
  %849 = vmatprep.mubr.f32.mxu0 0.0
  %850 = vmatmul.mubr.f32.gmra.mrb[0].mxu0 %v745
  %v851 = vpop.f32.mrb[0].mxu0
  %v852 = vadd.f32 0.0, %v851
  %v853 = vpop.f32.mrb[0].mxu0
  %v854 = vadd.f32 0.0, %v853
  %855 = vdwg.mxu0
  %856 = vst [vmem:[#allocation2] sm:$0xff] %v846
  %857 = vst [vmem:[#allocation2 + $0x8] sm:$0xff] %v848
  %858 = vst [vmem:[#allocation2 + $0x10] sm:$0xff] %v852
  %859 = vst [vmem:[#allocation2 + $0x18] sm:$0xff] %v854
  %s860 = scalar_lea.vmem %s7, 1024
  %v861 = vld [vmem:[%s860] sm:$0xff]
  %v862 = vld [vmem:[%s860 + $0x8] sm:$0xff]
  %v863 = vld [vmem:[%s860 + $0x10] sm:$0xff]
  %v864 = vld [vmem:[%s860 + $0x18] sm:$0xff]
  %v865 = vld [vmem:[%s860 + $0x20] sm:$0xff]
  %v866 = vld [vmem:[%s860 + $0x28] sm:$0xff]
  %v867 = vld [vmem:[%s860 + $0x30] sm:$0xff]
  %v868 = vld [vmem:[%s860 + $0x38] sm:$0xff]
  %v869 = vld [vmem:[%s860 + $0x40] sm:$0xff]
  %v870 = vld [vmem:[%s860 + $0x48] sm:$0xff]
  %v871 = vld [vmem:[%s860 + $0x50] sm:$0xff]
  %v872 = vld [vmem:[%s860 + $0x58] sm:$0xff]
  %v873 = vld [vmem:[%s860 + $0x60] sm:$0xff]
  %v874 = vld [vmem:[%s860 + $0x68] sm:$0xff]
  %v875 = vld [vmem:[%s860 + $0x70] sm:$0xff]
  %v876 = vld [vmem:[%s860 + $0x78] sm:$0xff]
  %v877 = vld [vmem:[%s860 + $0x80] sm:$0xff]
  %v878 = vld [vmem:[%s860 + $0x88] sm:$0xff]
  %v879 = vld [vmem:[%s860 + $0x90] sm:$0xff]
  %v880 = vld [vmem:[%s860 + $0x98] sm:$0xff]
  %v881 = vld [vmem:[%s860 + $0xa0] sm:$0xff]
  %v882 = vld [vmem:[%s860 + $0xa8] sm:$0xff]
  %v883 = vld [vmem:[%s860 + $0xb0] sm:$0xff]
  %v884 = vld [vmem:[%s860 + $0xb8] sm:$0xff]
  %v885 = vld [vmem:[%s860 + $0xc0] sm:$0xff]
  %v886 = vld [vmem:[%s860 + $0xc8] sm:$0xff]
  %v887 = vld [vmem:[%s860 + $0xd0] sm:$0xff]
  %v888 = vld [vmem:[%s860 + $0xd8] sm:$0xff]
  %v889 = vld [vmem:[%s860 + $0xe0] sm:$0xff]
  %v890 = vld [vmem:[%s860 + $0xe8] sm:$0xff]
  %v891 = vld [vmem:[%s860 + $0xf0] sm:$0xff]
  %v892 = vld [vmem:[%s860 + $0xf8] sm:$0xff]
  %893 = vmatprep.subr.mxu0 %v862
  %894 = vmatpush1.msra.mxu0 %v861
  %895 = vmatprep.subr.mxu0 %v864
  %896 = vmatpush1.msra.mxu0 %v863
  %897 = vmatprep.subr.mxu0 %v866
  %898 = vmatpush1.msra.mxu0 %v865
  %899 = vmatprep.subr.mxu0 %v868
  %900 = vmatpush1.msra.mxu0 %v867
  %901 = vmatprep.subr.mxu0 %v870
  %902 = vmatpush1.msra.mxu0 %v869
  %903 = vmatprep.subr.mxu0 %v872
  %904 = vmatpush1.msra.mxu0 %v871
  %905 = vmatprep.subr.mxu0 %v874
  %906 = vmatpush1.msra.mxu0 %v873
  %907 = vmatprep.subr.mxu0 %v876
  %908 = vmatpush1.msra.mxu0 %v875
  %909 = vmatprep.subr.mxu0 %v878
  %910 = vmatpush1.msra.mxu0 %v877
  %911 = vmatprep.subr.mxu0 %v880
  %912 = vmatpush1.msra.mxu0 %v879
  %913 = vmatprep.subr.mxu0 %v882
  %914 = vmatpush1.msra.mxu0 %v881
  %915 = vmatprep.subr.mxu0 %v884
  %916 = vmatpush1.msra.mxu0 %v883
  %917 = vmatprep.subr.mxu0 %v886
  %918 = vmatpush1.msra.mxu0 %v885
  %919 = vmatprep.subr.mxu0 %v888
  %920 = vmatpush1.msra.mxu0 %v887
  %921 = vmatprep.subr.mxu0 %v890
  %922 = vmatpush1.msra.mxu0 %v889
  %923 = vmatprep.subr.mxu0 %v892
  %924 = vmatpush1.msra.mxu0 %v891
  %925 = vmatprep.subr.mxu0 0.0
  %926 = vmatpush1.msra.mxu0 0.0
  %927 = vmatprep.subr.mxu0 0.0
  %928 = vmatpush1.msra.mxu0 0.0
  %929 = vmatprep.subr.mxu0 0.0
  %930 = vmatpush1.msra.mxu0 0.0
  %931 = vmatprep.subr.mxu0 0.0
  %932 = vmatpush1.msra.mxu0 0.0
  %933 = vmatprep.subr.mxu0 0.0
  %934 = vmatpush1.msra.mxu0 0.0
  %935 = vmatprep.subr.mxu0 0.0
  %936 = vmatpush1.msra.mxu0 0.0
  %937 = vmatprep.subr.mxu0 0.0
  %938 = vmatpush1.msra.mxu0 0.0
  %939 = vmatprep.subr.mxu0 0.0
  %940 = vmatpush1.msra.mxu0 0.0
  %941 = vmatprep.subr.mxu0 0.0
  %942 = vmatpush1.msra.mxu0 0.0
  %943 = vmatprep.subr.mxu0 0.0
  %944 = vmatpush1.msra.mxu0 0.0
  %945 = vmatprep.subr.mxu0 0.0
  %946 = vmatpush1.msra.mxu0 0.0
  %947 = vmatprep.subr.mxu0 0.0
  %948 = vmatpush1.msra.mxu0 0.0
  %949 = vmatprep.subr.mxu0 0.0
  %950 = vmatpush1.msra.mxu0 0.0
  %951 = vmatprep.subr.mxu0 0.0
  %952 = vmatpush1.msra.mxu0 0.0
  %953 = vmatprep.subr.mxu0 0.0
  %954 = vmatpush1.msra.mxu0 0.0
  %955 = vmatprep.subr.mxu0 0.0
  %956 = vmatpush1.msra.mxu0 0.0
  %957 = vmatprep.mubr.f32.mxu0 0.0
  %958 = vmatmul.mubr.f32.gmra.mrb[0].mxu0 %v744
  %v959 = vpop.f32.mrb[0].mxu0
  %v960 = vadd.f32 0.0, %v959
  %v961 = vpop.f32.mrb[0].mxu0
  %v962 = vadd.f32 0.0, %v961
  %963 = vmatprep.mubr.f32.mxu0 0.0
  %964 = vmatmul.mubr.f32.gmra.mrb[0].mxu0 %v745
  %v965 = vpop.f32.mrb[0].mxu0
  %v966 = vadd.f32 0.0, %v965
  %v967 = vpop.f32.mrb[0].mxu0
  %v968 = vadd.f32 0.0, %v967
  %969 = vdwg.mxu0
  %970 = vst [vmem:[#allocation2 + $0x20] sm:$0xff] %v960
  %971 = vst [vmem:[#allocation2 + $0x28] sm:$0xff] %v962
  %972 = vst [vmem:[#allocation2 + $0x30] sm:$0xff] %v966
  %973 = vst [vmem:[#allocation2 + $0x38] sm:$0xff] %v968
  %s974 = scalar_lea.vmem %s7, 1280
  %v975 = vld [vmem:[%s974] sm:$0xff]
  %v976 = vld [vmem:[%s974 + $0x8] sm:$0xff]
  %v977 = vld [vmem:[%s974 + $0x10] sm:$0xff]
  %v978 = vld [vmem:[%s974 + $0x18] sm:$0xff]
  %v979 = vld [vmem:[%s974 + $0x20] sm:$0xff]
  %v980 = vld [vmem:[%s974 + $0x28] sm:$0xff]
  %v981 = vld [vmem:[%s974 + $0x30] sm:$0xff]
  %v982 = vld [vmem:[%s974 + $0x38] sm:$0xff]
  %v983 = vld [vmem:[%s974 + $0x40] sm:$0xff]
  %v984 = vld [vmem:[%s974 + $0x48] sm:$0xff]
  %v985 = vld [vmem:[%s974 + $0x50] sm:$0xff]
  %v986 = vld [vmem:[%s974 + $0x58] sm:$0xff]
  %v987 = vld [vmem:[%s974 + $0x60] sm:$0xff]
  %v988 = vld [vmem:[%s974 + $0x68] sm:$0xff]
  %v989 = vld [vmem:[%s974 + $0x70] sm:$0xff]
  %v990 = vld [vmem:[%s974 + $0x78] sm:$0xff]
  %v991 = vld [vmem:[%s974 + $0x80] sm:$0xff]
  %v992 = vld [vmem:[%s974 + $0x88] sm:$0xff]
  %v993 = vld [vmem:[%s974 + $0x90] sm:$0xff]
  %v994 = vld [vmem:[%s974 + $0x98] sm:$0xff]
  %v995 = vld [vmem:[%s974 + $0xa0] sm:$0xff]
  %v996 = vld [vmem:[%s974 + $0xa8] sm:$0xff]
  %v997 = vld [vmem:[%s974 + $0xb0] sm:$0xff]
  %v998 = vld [vmem:[%s974 + $0xb8] sm:$0xff]
  %v999 = vld [vmem:[%s974 + $0xc0] sm:$0xff]
  %v1000 = vld [vmem:[%s974 + $0xc8] sm:$0xff]
  %v1001 = vld [vmem:[%s974 + $0xd0] sm:$0xff]
  %v1002 = vld [vmem:[%s974 + $0xd8] sm:$0xff]
  %v1003 = vld [vmem:[%s974 + $0xe0] sm:$0xff]
  %v1004 = vld [vmem:[%s974 + $0xe8] sm:$0xff]
  %v1005 = vld [vmem:[%s974 + $0xf0] sm:$0xff]
  %v1006 = vld [vmem:[%s974 + $0xf8] sm:$0xff]
  %1007 = vmatprep.subr.mxu0 %v976
  %1008 = vmatpush1.msra.mxu0 %v975
  %1009 = vmatprep.subr.mxu0 %v978
  %1010 = vmatpush1.msra.mxu0 %v977
  %1011 = vmatprep.subr.mxu0 %v980
  %1012 = vmatpush1.msra.mxu0 %v979
  %1013 = vmatprep.subr.mxu0 %v982
  %1014 = vmatpush1.msra.mxu0 %v981
  %1015 = vmatprep.subr.mxu0 %v984
  %1016 = vmatpush1.msra.mxu0 %v983
  %1017 = vmatprep.subr.mxu0 %v986
  %1018 = vmatpush1.msra.mxu0 %v985
  %1019 = vmatprep.subr.mxu0 %v988
  %1020 = vmatpush1.msra.mxu0 %v987
  %1021 = vmatprep.subr.mxu0 %v990
  %1022 = vmatpush1.msra.mxu0 %v989
  %1023 = vmatprep.subr.mxu0 %v992
  %1024 = vmatpush1.msra.mxu0 %v991
  %1025 = vmatprep.subr.mxu0 %v994
  %1026 = vmatpush1.msra.mxu0 %v993
  %1027 = vmatprep.subr.mxu0 %v996
  %1028 = vmatpush1.msra.mxu0 %v995
  %1029 = vmatprep.subr.mxu0 %v998
  %1030 = vmatpush1.msra.mxu0 %v997
  %1031 = vmatprep.subr.mxu0 %v1000
  %1032 = vmatpush1.msra.mxu0 %v999
  %1033 = vmatprep.subr.mxu0 %v1002
  %1034 = vmatpush1.msra.mxu0 %v1001
  %1035 = vmatprep.subr.mxu0 %v1004
  %1036 = vmatpush1.msra.mxu0 %v1003
  %1037 = vmatprep.subr.mxu0 %v1006
  %1038 = vmatpush1.msra.mxu0 %v1005
  %1039 = vmatprep.subr.mxu0 0.0
  %1040 = vmatpush1.msra.mxu0 0.0
  %1041 = vmatprep.subr.mxu0 0.0
  %1042 = vmatpush1.msra.mxu0 0.0
  %1043 = vmatprep.subr.mxu0 0.0
  %1044 = vmatpush1.msra.mxu0 0.0
  %1045 = vmatprep.subr.mxu0 0.0
  %1046 = vmatpush1.msra.mxu0 0.0
  %1047 = vmatprep.subr.mxu0 0.0
  %1048 = vmatpush1.msra.mxu0 0.0
  %1049 = vmatprep.subr.mxu0 0.0
  %1050 = vmatpush1.msra.mxu0 0.0
  %1051 = vmatprep.subr.mxu0 0.0
  %1052 = vmatpush1.msra.mxu0 0.0
  %1053 = vmatprep.subr.mxu0 0.0
  %1054 = vmatpush1.msra.mxu0 0.0
  %1055 = vmatprep.subr.mxu0 0.0
  %1056 = vmatpush1.msra.mxu0 0.0
  %1057 = vmatprep.subr.mxu0 0.0
  %1058 = vmatpush1.msra.mxu0 0.0
  %1059 = vmatprep.subr.mxu0 0.0
  %1060 = vmatpush1.msra.mxu0 0.0
  %1061 = vmatprep.subr.mxu0 0.0
  %1062 = vmatpush1.msra.mxu0 0.0
  %1063 = vmatprep.subr.mxu0 0.0
  %1064 = vmatpush1.msra.mxu0 0.0
  %1065 = vmatprep.subr.mxu0 0.0
  %1066 = vmatpush1.msra.mxu0 0.0
  %1067 = vmatprep.subr.mxu0 0.0
  %1068 = vmatpush1.msra.mxu0 0.0
  %1069 = vmatprep.subr.mxu0 0.0
  %1070 = vmatpush1.msra.mxu0 0.0
  %1071 = vmatprep.mubr.f32.mxu0 0.0
  %1072 = vmatmul.mubr.f32.gmra.mrb[0].mxu0 %v744
  %v1073 = vpop.f32.mrb[0].mxu0
  %v1074 = vadd.f32 0.0, %v1073
  %v1075 = vpop.f32.mrb[0].mxu0
  %v1076 = vadd.f32 0.0, %v1075
  %1077 = vmatprep.mubr.f32.mxu0 0.0
  %1078 = vmatmul.mubr.f32.gmra.mrb[0].mxu0 %v745
  %v1079 = vpop.f32.mrb[0].mxu0
  %v1080 = vadd.f32 0.0, %v1079
  %v1081 = vpop.f32.mrb[0].mxu0
  %v1082 = vadd.f32 0.0, %v1081
  %1083 = vdwg.mxu0
  %1084 = vst [vmem:[#allocation2 + $0x40] sm:$0xff] %v1074
  %1085 = vst [vmem:[#allocation2 + $0x48] sm:$0xff] %v1076
  %1086 = vst [vmem:[#allocation2 + $0x50] sm:$0xff] %v1080
  %1087 = vst [vmem:[#allocation2 + $0x58] sm:$0xff] %v1082
  %v1088 = vld [vmem:[%s2] sm:$0xff]
  %v1089 = vld [vmem:[%s2 + $0x8] sm:$0xff]
  %v1090 = vld [vmem:[#allocation2] sm:$0xff]
  %v1091 = vld [vmem:[#allocation2 + $0x8] sm:$0xff]
  %v1092 = vld [vmem:[#allocation2 + $0x10] sm:$0xff]
  %v1093 = vld [vmem:[#allocation2 + $0x18] sm:$0xff]
  %v1094 = vld [vmem:[#allocation2 + $0x20] sm:$0xff]
  %v1095 = vld [vmem:[#allocation2 + $0x28] sm:$0xff]
  %v1096 = vld [vmem:[#allocation2 + $0x30] sm:$0xff]
  %v1097 = vld [vmem:[#allocation2 + $0x38] sm:$0xff]
  %v1098 = vld [vmem:[#allocation2 + $0x40] sm:$0xff]
  %v1099 = vld [vmem:[#allocation2 + $0x48] sm:$0xff]
  %v1100 = vld [vmem:[#allocation2 + $0x50] sm:$0xff]
  %v1101 = vld [vmem:[#allocation2 + $0x58] sm:$0xff]
  %s1102 = scalar_lea.vmem %s8, 2
  %v1103 = vld [vmem:[%s1102] sm:$0x3]
  %v1105 = vlaneseq
  %v1106 = vshrl.u32 %v1105, 7
  %v1107 = vsub.s32 0, %v1106
  %v1108 = vrot.slane %v1103, %v1107
  %v1109 = vlaneseq
  %v1110 = vshrl.u32 %v1109, 7
  %v1111 = vsub.s32 1, %v1110
  %v1112 = vrot.slane %v1103, %v1111
  %v1116 = vsel %vm644, %v1088, 0
  %v1119 = vsel %vm644, %v1089, 0
  %1121 = vmatprep.subr.mxu0 %v1091
  %1122 = vmatpush1.msra.mxu0 %v1090
  %1123 = vmatprep.subr.mxu0 %v1093
  %1124 = vmatpush1.msra.mxu0 %v1092
  %1125 = vmatprep.subr.mxu0 %v1095
  %1126 = vmatpush1.msra.mxu0 %v1094
  %1127 = vmatprep.subr.mxu0 %v1097
  %1128 = vmatpush1.msra.mxu0 %v1096
  %1129 = vmatprep.subr.mxu0 %v1099
  %1130 = vmatpush1.msra.mxu0 %v1098
  %1131 = vmatprep.subr.mxu0 %v1101
  %1132 = vmatpush1.msra.mxu0 %v1100
  %1133 = vmatprep.subr.mxu0 0.0
  %1134 = vmatpush1.msra.mxu0 0.0
  %1135 = vmatprep.subr.mxu0 0.0
  %1136 = vmatpush1.msra.mxu0 0.0
  %1137 = vmatprep.subr.mxu0 0.0
  %1138 = vmatpush1.msra.mxu0 0.0
  %1139 = vmatprep.subr.mxu0 0.0
  %1140 = vmatpush1.msra.mxu0 0.0
  %1141 = vmatprep.subr.mxu0 0.0
  %1142 = vmatpush1.msra.mxu0 0.0
  %1143 = vmatprep.subr.mxu0 0.0
  %1144 = vmatpush1.msra.mxu0 0.0
  %1145 = vmatprep.subr.mxu0 0.0
  %1146 = vmatpush1.msra.mxu0 0.0
  %1147 = vmatprep.subr.mxu0 0.0
  %1148 = vmatpush1.msra.mxu0 0.0
  %1149 = vmatprep.subr.mxu0 0.0
  %1150 = vmatpush1.msra.mxu0 0.0
  %1151 = vmatprep.subr.mxu0 0.0
  %1152 = vmatpush1.msra.mxu0 0.0
  %1153 = vmatprep.subr.mxu0 0.0
  %1154 = vmatpush1.msra.mxu0 0.0
  %1155 = vmatprep.subr.mxu0 0.0
  %1156 = vmatpush1.msra.mxu0 0.0
  %1157 = vmatprep.subr.mxu0 0.0
  %1158 = vmatpush1.msra.mxu0 0.0
  %1159 = vmatprep.subr.mxu0 0.0
  %1160 = vmatpush1.msra.mxu0 0.0
  %1161 = vmatprep.subr.mxu0 0.0
  %1162 = vmatpush1.msra.mxu0 0.0
  %1163 = vmatprep.subr.mxu0 0.0
  %1164 = vmatpush1.msra.mxu0 0.0
  %1165 = vmatprep.subr.mxu0 0.0
  %1166 = vmatpush1.msra.mxu0 0.0
  %1167 = vmatprep.subr.mxu0 0.0
  %1168 = vmatpush1.msra.mxu0 0.0
  %1169 = vmatprep.subr.mxu0 0.0
  %1170 = vmatpush1.msra.mxu0 0.0
  %1171 = vmatprep.subr.mxu0 0.0
  %1172 = vmatpush1.msra.mxu0 0.0
  %1173 = vmatprep.subr.mxu0 0.0
  %1174 = vmatpush1.msra.mxu0 0.0
  %1175 = vmatprep.subr.mxu0 0.0
  %1176 = vmatpush1.msra.mxu0 0.0
  %1177 = vmatprep.subr.mxu0 0.0
  %1178 = vmatpush1.msra.mxu0 0.0
  %1179 = vmatprep.subr.mxu0 0.0
  %1180 = vmatpush1.msra.mxu0 0.0
  %1181 = vmatprep.subr.mxu0 0.0
  %1182 = vmatpush1.msra.mxu0 0.0
  %1183 = vmatprep.subr.mxu0 0.0
  %1184 = vmatpush1.msra.mxu0 0.0
  %1185 = vmatprep.mubr.f32.mxu0 0.0
  %1186 = vmatmul.mubr.f32.gmra.mrb[0].mxu0 %v1116
  %v1187 = vpop.f32.mrb[0].mxu0
  %v1188 = vadd.f32 %v1108, %v1187
  %v1189 = vpop.f32.mrb[0].mxu0
  %v1190 = vadd.f32 %v1112, %v1189
  %1191 = vmatprep.mubr.f32.mxu0 0.0
  %1192 = vmatmul.mubr.f32.gmra.mrb[0].mxu0 %v1119
  %v1193 = vpop.f32.mrb[0].mxu0
  %v1194 = vadd.f32 %v1108, %v1193
  %v1195 = vpop.f32.mrb[0].mxu0
  %v1196 = vadd.f32 %v1112, %v1195
  %1197 = vdwg.mxu0
  %v1198 = vmax.f32 %v1188, 0.0
  %v1199 = vmax.f32 %v1194, 0.0
  %v1200 = vxor.u32 %v1190, 2147483648
  %v1201 = vxor.u32 %v1196, 2147483648
  %v1202 = vmul.f32 %v1200, 1.442695
  %v1203 = vpow.pop %v1202
  %v1204 = vmul.f32 %v1201, 1.442695
  %v1205 = vpow.pop %v1204
  %v1206 = vadd.f32 %v1203, 1.0
  %v1207 = vadd.f32 %v1205, 1.0
  %v1208 = vrcp.pop %v1206
  %v1209 = vmul.f32 1.0, %v1208
  %v1210 = vrcp.pop %v1207
  %v1211 = vmul.f32 1.0, %v1210
  %v1212 = vmul.f32 %v1198, %v1209
  %v1213 = vmul.f32 %v1199, %v1211
  %v1214 = vadd.f32 %v1212, %v744
  %v1215 = vadd.f32 %v1213, %v745
  %v1216 = vld [vmem:[%s9] sm:$0xff]
  %v1217 = vld [vmem:[%s9 + $0x8] sm:$0xff]
  %v1218 = vld [vmem:[%s9 + $0x10] sm:$0xff]
  %v1219 = vld [vmem:[%s9 + $0x18] sm:$0xff]
  %v1220 = vld [vmem:[%s9 + $0x20] sm:$0xff]
  %v1221 = vld [vmem:[%s9 + $0x28] sm:$0xff]
  %v1222 = vld [vmem:[%s9 + $0x30] sm:$0xff]
  %v1223 = vld [vmem:[%s9 + $0x38] sm:$0xff]
  %v1224 = vld [vmem:[%s9 + $0x40] sm:$0xff]
  %v1225 = vld [vmem:[%s9 + $0x48] sm:$0xff]
  %v1226 = vld [vmem:[%s9 + $0x50] sm:$0xff]
  %v1227 = vld [vmem:[%s9 + $0x58] sm:$0xff]
  %v1228 = vld [vmem:[%s9 + $0x60] sm:$0xff]
  %v1229 = vld [vmem:[%s9 + $0x68] sm:$0xff]
  %v1230 = vld [vmem:[%s9 + $0x70] sm:$0xff]
  %v1231 = vld [vmem:[%s9 + $0x78] sm:$0xff]
  %v1232 = vld [vmem:[%s10] sm:$0x1]
  %v1234 = vlaneseq
  %v1235 = vshrl.u32 %v1234, 7
  %v1236 = vsub.s32 0, %v1235
  %v1237 = vrot.slane %v1232, %v1236
  %1239 = vmatprep.subr.mxu0 0.0
  %1240 = vmatpush1.msra.mxu0 %v1216
  %1241 = vmatprep.subr.mxu0 0.0
  %1242 = vmatpush1.msra.mxu0 %v1217
  %1243 = vmatprep.subr.mxu0 0.0
  %1244 = vmatpush1.msra.mxu0 %v1218
  %1245 = vmatprep.subr.mxu0 0.0
  %1246 = vmatpush1.msra.mxu0 %v1219
  %1247 = vmatprep.subr.mxu0 0.0
  %1248 = vmatpush1.msra.mxu0 %v1220
  %1249 = vmatprep.subr.mxu0 0.0
  %1250 = vmatpush1.msra.mxu0 %v1221
  %1251 = vmatprep.subr.mxu0 0.0
  %1252 = vmatpush1.msra.mxu0 %v1222
  %1253 = vmatprep.subr.mxu0 0.0
  %1254 = vmatpush1.msra.mxu0 %v1223
  %1255 = vmatprep.subr.mxu0 0.0
  %1256 = vmatpush1.msra.mxu0 %v1224
  %1257 = vmatprep.subr.mxu0 0.0
  %1258 = vmatpush1.msra.mxu0 %v1225
  %1259 = vmatprep.subr.mxu0 0.0
  %1260 = vmatpush1.msra.mxu0 %v1226
  %1261 = vmatprep.subr.mxu0 0.0
  %1262 = vmatpush1.msra.mxu0 %v1227
  %1263 = vmatprep.subr.mxu0 0.0
  %1264 = vmatpush1.msra.mxu0 %v1228
  %1265 = vmatprep.subr.mxu0 0.0
  %1266 = vmatpush1.msra.mxu0 %v1229
  %1267 = vmatprep.subr.mxu0 0.0
  %1268 = vmatpush1.msra.mxu0 %v1230
  %1269 = vmatprep.subr.mxu0 0.0
  %1270 = vmatpush1.msra.mxu0 %v1231
  %1271 = vmatprep.subr.mxu0 0.0
  %1272 = vmatpush1.msra.mxu0 0.0
  %1273 = vmatprep.subr.mxu0 0.0
  %1274 = vmatpush1.msra.mxu0 0.0
  %1275 = vmatprep.subr.mxu0 0.0
  %1276 = vmatpush1.msra.mxu0 0.0
  %1277 = vmatprep.subr.mxu0 0.0
  %1278 = vmatpush1.msra.mxu0 0.0
  %1279 = vmatprep.subr.mxu0 0.0
  %1280 = vmatpush1.msra.mxu0 0.0
  %1281 = vmatprep.subr.mxu0 0.0
  %1282 = vmatpush1.msra.mxu0 0.0
  %1283 = vmatprep.subr.mxu0 0.0
  %1284 = vmatpush1.msra.mxu0 0.0
  %1285 = vmatprep.subr.mxu0 0.0
  %1286 = vmatpush1.msra.mxu0 0.0
  %1287 = vmatprep.subr.mxu0 0.0
  %1288 = vmatpush1.msra.mxu0 0.0
  %1289 = vmatprep.subr.mxu0 0.0
  %1290 = vmatpush1.msra.mxu0 0.0
  %1291 = vmatprep.subr.mxu0 0.0
  %1292 = vmatpush1.msra.mxu0 0.0
  %1293 = vmatprep.subr.mxu0 0.0
  %1294 = vmatpush1.msra.mxu0 0.0
  %1295 = vmatprep.subr.mxu0 0.0
  %1296 = vmatpush1.msra.mxu0 0.0
  %1297 = vmatprep.subr.mxu0 0.0
  %1298 = vmatpush1.msra.mxu0 0.0
  %1299 = vmatprep.subr.mxu0 0.0
  %1300 = vmatpush1.msra.mxu0 0.0
  %1301 = vmatprep.subr.mxu0 0.0
  %1302 = vmatpush1.msra.mxu0 0.0
  %1303 = vmatprep.mubr.f32.mxu0 0.0
  %1304 = vmatmul.mubr.f32.gmra.mrb[0].mxu0 %v1214
  %v1305 = vpop.f32.mrb[0].mxu0
  %v1306 = vadd.f32 %v1237, %v1305
  %v1307 = vpop.f32.mrb[0].mxu0
  %1308 = vmatprep.mubr.f32.mxu0 0.0
  %1309 = vmatmul.mubr.f32.gmra.mrb[0].mxu0 %v1215
  %v1310 = vpop.f32.mrb[0].mxu0
  %v1311 = vadd.f32 %v1237, %v1310
  %v1312 = vpop.f32.mrb[0].mxu0
  %1313 = vdwg.mxu0
  %v1314 = vld [vmem:[%s3] sm:$0x3f]
  %vm1315 = vcmask 130048
  %v1317 = vsel %vm1315, %v1314, 0
  %1319 = vmatprep.subr.mxu0 0.0
  %1320 = vmatpush1.msra.mxu0 %v1306
  %1321 = vmatprep.subr.mxu0 0.0
  %1322 = vmatpush1.msra.mxu0 %v1311
  %1323 = vmatprep.subr.mxu0 0.0
  %1324 = vmatpush1.msra.mxu0 0.0
  %1325 = vmatprep.subr.mxu0 0.0
  %1326 = vmatpush1.msra.mxu0 0.0
  %1327 = vmatprep.subr.mxu0 0.0
  %1328 = vmatpush1.msra.mxu0 0.0
  %1329 = vmatprep.subr.mxu0 0.0
  %1330 = vmatpush1.msra.mxu0 0.0
  %1331 = vmatprep.subr.mxu0 0.0
  %1332 = vmatpush1.msra.mxu0 0.0
  %1333 = vmatprep.subr.mxu0 0.0
  %1334 = vmatpush1.msra.mxu0 0.0
  %1335 = vmatprep.subr.mxu0 0.0
  %1336 = vmatpush1.msra.mxu0 0.0
  %1337 = vmatprep.subr.mxu0 0.0
  %1338 = vmatpush1.msra.mxu0 0.0
  %1339 = vmatprep.subr.mxu0 0.0
  %1340 = vmatpush1.msra.mxu0 0.0
  %1341 = vmatprep.subr.mxu0 0.0
  %1342 = vmatpush1.msra.mxu0 0.0
  %1343 = vmatprep.subr.mxu0 0.0
  %1344 = vmatpush1.msra.mxu0 0.0
  %1345 = vmatprep.subr.mxu0 0.0
  %1346 = vmatpush1.msra.mxu0 0.0
  %1347 = vmatprep.subr.mxu0 0.0
  %1348 = vmatpush1.msra.mxu0 0.0
  %1349 = vmatprep.subr.mxu0 0.0
  %1350 = vmatpush1.msra.mxu0 0.0
  %1351 = vmatprep.subr.mxu0 0.0
  %1352 = vmatpush1.msra.mxu0 0.0
  %1353 = vmatprep.subr.mxu0 0.0
  %1354 = vmatpush1.msra.mxu0 0.0
  %1355 = vmatprep.subr.mxu0 0.0
  %1356 = vmatpush1.msra.mxu0 0.0
  %1357 = vmatprep.subr.mxu0 0.0
  %1358 = vmatpush1.msra.mxu0 0.0
  %1359 = vmatprep.subr.mxu0 0.0
  %1360 = vmatpush1.msra.mxu0 0.0
  %1361 = vmatprep.subr.mxu0 0.0
  %1362 = vmatpush1.msra.mxu0 0.0
  %1363 = vmatprep.subr.mxu0 0.0
  %1364 = vmatpush1.msra.mxu0 0.0
  %1365 = vmatprep.subr.mxu0 0.0
  %1366 = vmatpush1.msra.mxu0 0.0
  %1367 = vmatprep.subr.mxu0 0.0
  %1368 = vmatpush1.msra.mxu0 0.0
  %1369 = vmatprep.subr.mxu0 0.0
  %1370 = vmatpush1.msra.mxu0 0.0
  %1371 = vmatprep.subr.mxu0 0.0
  %1372 = vmatpush1.msra.mxu0 0.0
  %1373 = vmatprep.subr.mxu0 0.0
  %1374 = vmatpush1.msra.mxu0 0.0
  %1375 = vmatprep.subr.mxu0 0.0
  %1376 = vmatpush1.msra.mxu0 0.0
  %1377 = vmatprep.subr.mxu0 0.0
  %1378 = vmatpush1.msra.mxu0 0.0
  %1379 = vmatprep.subr.mxu0 0.0
  %1380 = vmatpush1.msra.mxu0 0.0
  %1381 = vmatprep.subr.mxu0 0.0
  %1382 = vmatpush1.msra.mxu0 0.0
  %1383 = vmatprep.mubr.f32.mxu0 0.0
  %1384 = vmatmul.mubr.f32.gmra.mrb[0].mxu0 %v1317
  %v1385 = vpop.f32.mrb[0].mxu0
  %v1386 = vadd.f32 0.0, %v1385
  %v1387 = vpop.f32.mrb[0].mxu0
  %1388 = vdwg.mxu0
  %vm1389 = vcmask 128000
  %1390 = vst.msk [vmem:[%s11] sm:$0x3f] %vm1389, %v1386
  // Predicated region
  $region46: #{forward.1} parent=0 // pred_check
    _
  $region47: #{forward.1} parent=0 // pred_check_branch
    %1392 = sbr.rel (0) target = $region49
  $region48: #{forward.1} parent=0 // pred_region
    _
  $region49: #{forward.1} parent=0 // pred_fallthru
    _
  // Predicated region
  $region50: #{forward.1} parent=0 // pred_check
    _
  $region51: #{forward.1} parent=0 // pred_check_branch
    %1394 = sbr.rel (0) target = $region53
  $region52: #{forward.1} parent=0 // pred_region
    _
  $region53: #{forward.1} parent=0 // pred_fallthru
    _

</llo_original>
